<compile_context>
chip_gen: v7x
topology: tpu7x:2x2x1
jax: 0.10.0
libtpu: 0.0.40
codegen_flags: <defaults>
</compile_context>

<pallas_src>
import functools

import jax
import jax.numpy as jnp
from jax.experimental import pallas as pl
from jax.experimental.pallas import tpu as pltpu

# bf16 MXU operands; accumulation / epilogue stay f32 in-kernel.
MXU_INPUT_DTYPE = jnp.bfloat16

_VMEM_BUDGET = 32 * 1024 * 1024    # target tile working set (fits v7x 64 MiB/TC)
_VMEM_LIMIT = 48 * 1024 * 1024     # scoped VMEM limit handed to Mosaic


# ----------------------------- Pallas kernel -------------------------------- #

def _fused_matmul_kernel(*refs, has_shift, has_residual):
    # refs: lhs, rhs, [shift], [residual], out, acc_scratch
    lhs_ref, rhs_ref = refs[0], refs[1]
    idx = 2
    if has_shift:
        shift_ref = refs[idx]
        idx += 1
    if has_residual:
        res_ref = refs[idx]
        idx += 1
    o_ref, acc_ref = refs[idx], refs[idx + 1]

    k = pl.program_id(2)

    @pl.when(k == 0)
    def _():
        acc_ref[...] = jnp.zeros_like(acc_ref)

    acc_ref[...] += jnp.dot(lhs_ref[...], rhs_ref[...],
                            preferred_element_type=jnp.float32)

    @pl.when(k == pl.num_programs(2) - 1)
    def _():
        out = acc_ref[...]
        if has_shift:                                   # fused BN-shift + ReLU
            out = jnp.maximum(out + shift_ref[...], 0.0)
        if has_residual:                                # fused residual add
            out = out + res_ref[...].astype(jnp.float32)
        o_ref[...] = out.astype(o_ref.dtype)


# ------------------------------ tile selection ------------------------------- #

def _round_up(x, m):
    return ((x + m - 1) // m) * m


def _pick_tiles(M, K, N, lhs_bytes, out_bytes, has_residual, has_shift):
    # Single Cout tile whenever the padded width is modest (WRN Cout<=640 -> 768):
    # the big im2col LHS slab then streams from HBM exactly once.
    Np = _round_up(N, 128)
    tn = Np if Np <= 768 else 256
    Np = _round_up(N, tn)

    # M tile: prefer a multiple-of-8 divisor of M (no M padding), capped at 512.
    tm_cap = min(512, _round_up(M, 8))
    tm = tm_cap
    if M % 8 == 0:
        t = tm_cap - (tm_cap % 8)
        while t >= 8:
            if M % t == 0:
                tm = t
                break
            t -= 8
    # v7x has 2 TensorCores: make sure the (i, j) parallel extent is >= 2.
    if ((Np // tn) * (_round_up(M, tm) // tm) < 2
            and tm % 16 == 0 and M % (tm // 2) == 0):
        tm //= 2
    Mp = _round_up(M, tm)

    # K tile: largest 128-multiple divisor of Kp that keeps the double-buffered
    # working set under budget (audited against v7x's 64 MiB/TC VMEM).
    fixed = (tm * tn * 4                                 # f32 accumulator scratch
             + 2 * tm * tn * out_bytes                   # double-buffered output
             + (2 * tm * tn * lhs_bytes if has_residual else 0)
             + (2 * tn * 4 if has_shift else 0))
    rem = max(_VMEM_BUDGET - fixed, 2 * 128 * (tm + tn) * lhs_bytes)
    tk_cap = max(128, rem // (2 * lhs_bytes * (tm + tn)))
    tk_cap = min(tk_cap, 2048)
    Kp = _round_up(K, 128)
    q = Kp // 128
    tk = 128
    for d in range(1, q + 1):
        if q % d == 0 and 128 * d <= tk_cap:
            tk = 128 * d
    return tm, tn, tk, Mp, Np, Kp


# ------------------------------ GEMM wrapper --------------------------------- #

def fused_matmul(lhs, rhs, *, shift=None, residual=None, out_dtype=jnp.float32):
    """out = epilogue(lhs @ rhs); lhs (M,K), rhs (K,N).  Tiled Pallas GEMM."""
    M, K = lhs.shape
    K2, N = rhs.shape
    assert K == K2
    has_shift = shift is not None
    has_residual = residual is not None

    lhs_bytes = jnp.dtype(lhs.dtype).itemsize
    out_bytes = jnp.dtype(out_dtype).itemsize
    tm, tn, tk, Mp, Np, Kp = _pick_tiles(M, K, N, lhs_bytes, out_bytes,
                                         has_residual, has_shift)

    # Lane / reduction padding only (tm divides M whenever M % 8 == 0, so the
    # M axis is normally not padded at all).
    lhs_p = jnp.pad(lhs, ((0, Mp - M), (0, Kp - K)))
    rhs_p = jnp.pad(rhs.astype(lhs.dtype), ((0, Kp - K), (0, Np - N)))

    in_specs = [
        pl.BlockSpec((tm, tk), lambda i, j, k: (i, k)),
        pl.BlockSpec((tk, tn), lambda i, j, k: (k, j)),
    ]
    args = [lhs_p, rhs_p]

    if has_shift:
        shift_p = jnp.pad(shift.reshape(1, N).astype(jnp.float32),
                          ((0, 0), (0, Np - N)))
        in_specs.append(pl.BlockSpec((1, tn), lambda i, j, k: (0, j)))
        args.append(shift_p)

    if has_residual:
        # Cast to the (bf16) MXU operand dtype before padding; lanes-only pad
        # when M needs no padding.  Added back in f32 inside the kernel.
        res_p = jnp.pad(residual.astype(lhs.dtype),
                        ((0, Mp - M), (0, Np - N)))
        in_specs.append(pl.BlockSpec((tm, tn), lambda i, j, k: (i, j)))
        args.append(res_p)

    grid = (Mp // tm, Np // tn, Kp // tk)
    cost = pl.CostEstimate(
        flops=int(2 * Mp * Kp * Np),
        transcendentals=0,
        bytes_accessed=int(Mp * Kp * lhs_bytes * (Np // tn)
                           + Kp * Np * lhs_bytes * (Mp // tm)
                           + Mp * Np * out_bytes
                           + (Mp * Np * lhs_bytes if has_residual else 0)),
    )

    out = pl.pallas_call(
        functools.partial(_fused_matmul_kernel,
                          has_shift=has_shift, has_residual=has_residual),
        out_shape=jax.ShapeDtypeStruct((Mp, Np), out_dtype),
        grid=grid,
        in_specs=in_specs,
        out_specs=pl.BlockSpec((tm, tn), lambda i, j, k: (i, j)),
        scratch_shapes=[pltpu.VMEM((tm, tn), jnp.float32)],
        compiler_params=pltpu.CompilerParams(
            dimension_semantics=("parallel", "parallel", "arbitrary"),
            vmem_limit_bytes=_VMEM_LIMIT,
        ),
        cost_estimate=cost,
    )(*args)

    return out[:M, :N]


# ------------------------------- conv wrapper -------------------------------- #

def conv2d(x, w, *, stride, padding, shift_out=None, residual=None,
           compute_dtype=jnp.float32, out_dtype=jnp.float32):
    """Bias-free conv (NHWC x / HWIO w) via bf16 im2col + fused Pallas GEMM.

    Optional fused epilogue: relu(out + shift_out), then + residual.
    """
    N_, H, W, Cin = x.shape
    Kh, Kw, _, Cout = w.shape
    x = x.astype(compute_dtype)           # slab is built directly in bf16
    if padding:
        x = jnp.pad(x, ((0, 0), (padding, padding), (padding, padding), (0, 0)))
    Ho = (H + 2 * padding - Kh) // stride + 1
    Wo = (W + 2 * padding - Kw) // stride + 1
    M = N_ * Ho * Wo

    # im2col layout glue (plain JAX) -> single (M, Kh*Kw*Cin) GEMM LHS.
    cols = []
    for kh in range(Kh):
        for kw in range(Kw):
            patch = jax.lax.slice(
                x, (0, kh, kw, 0),
                (N_, kh + (Ho - 1) * stride + 1, kw + (Wo - 1) * stride + 1, Cin),
                (1, stride, stride, 1))
            cols.append(patch.reshape(M, Cin))
    lhs = cols[0] if len(cols) == 1 else jnp.concatenate(cols, axis=1)
    rhs = w.reshape(Kh * Kw * Cin, Cout).astype(compute_dtype)
    res2 = (residual.reshape(M, Cout).astype(compute_dtype)
            if residual is not None else None)

    out2 = fused_matmul(lhs, rhs, shift=shift_out, residual=res2,
                        out_dtype=out_dtype)
    return out2.reshape(N_, Ho, Wo, Cout)


# ------------------------- parameter initialization -------------------------- #

def _bn_affine(key, c):
    k1, k2, k3, k4 = jax.random.split(key, 4)
    gamma = jax.random.uniform(k1, (c,), jnp.float32, 0.5, 1.5)
    beta = 0.1 * jax.random.normal(k2, (c,), jnp.float32)
    mean = 0.1 * jax.random.normal(k3, (c,), jnp.float32)
    var = jax.random.uniform(k4, (c,), jnp.float32, 0.5, 1.5)
    eps = 1e-5  # PyTorch BatchNorm2d default
    scale = gamma / jnp.sqrt(var + eps)
    shift = beta - mean * scale
    return scale.reshape(1, c), shift.reshape(1, c)


def _conv_weight(key, k, cin, cout):
    # WideResNet init: N(0, sqrt(2 / (k*k*cout))); stored as HWIO.
    std = (2.0 / (k * k * cout)) ** 0.5
    return std * jax.random.normal(key, (k, k, cin, cout), jnp.float32)


def init_basic_block(key, in_planes, out_planes, stride):
    ks = jax.random.split(key, 5)
    p = {"stride": stride, "equal": in_planes == out_planes}
    p["bn1_scale"], p["bn1_shift"] = _bn_affine(ks[0], in_planes)
    p["bn2_scale"], p["bn2_shift"] = _bn_affine(ks[1], out_planes)
    p["w1"] = _conv_weight(ks[2], 3, in_planes, out_planes)
    p["w2"] = _conv_weight(ks[3], 3, out_planes, out_planes)
    if not p["equal"]:
        p["w_short"] = _conv_weight(ks[4], 1, in_planes, out_planes)
    return p


def init_network_block(key, nb_layers, in_planes, out_planes, stride):
    params = []
    for i in range(nb_layers):
        key, sub = jax.random.split(key)
        cin = in_planes if i == 0 else out_planes
        s = stride if i == 0 else 1
        params.append(init_basic_block(sub, cin, out_planes, s))
    return params


# ------------------------------- forward pass -------------------------------- #

def basic_block_forward(x, p, compute_dtype, out_dtype):
    # x: NHWC.  Mirrors the WideResNet BasicBlock forward (dropRate == 0).
    # BN1 + ReLU: plain-JAX elementwise (f32), then cast to the bf16 operand
    # dtype; XLA fuses it into the im2col slab materialization (it can't be an
    # exact in-kernel prologue because the 3x3 conv zero-pads *after* it).
    o = jnp.maximum(x.astype(jnp.float32) * p["bn1_scale"].reshape(1, 1, 1, -1)
                    + p["bn1_shift"].reshape(1, 1, 1, -1), 0.0)
    o = o.astype(compute_dtype)

    if p["equal"]:
        shortcut = x
    else:
        shortcut = conv2d(o, p["w_short"], stride=p["stride"], padding=0,
                          compute_dtype=compute_dtype, out_dtype=compute_dtype)

    # conv1 with bn2_scale folded into the weight columns (exact for bias-free
    # conv); in-kernel epilogue is relu(acc + shift).  Output kept in bf16.
    w1_folded = p["w1"] * p["bn2_scale"].reshape(1, 1, 1, -1)
    h = conv2d(o, w1_folded, stride=p["stride"], padding=1,
               shift_out=p["bn2_shift"],
               compute_dtype=compute_dtype, out_dtype=compute_dtype)

    # conv2 (stride 1, pad 1) with fused residual add epilogue (in-kernel).
    return conv2d(h, p["w2"], stride=1, padding=1, residual=shortcut,
                  compute_dtype=compute_dtype, out_dtype=out_dtype)


def network_block_forward(x_nchw, params, compute_dtype=jnp.float32):
    x = jnp.transpose(x_nchw, (0, 2, 3, 1))   # NCHW -> NHWC
    n = len(params)
    for i, p in enumerate(params):
        od = jnp.float32 if i == n - 1 else compute_dtype
        x = basic_block_forward(x, p, compute_dtype, od)
    return jnp.transpose(x, (0, 3, 1, 2))     # NHWC -> NCHW


# ------------------------- pure-JAX reference check --------------------------- #

def _conv_ref(x, w, stride, padding):
    return jax.lax.conv_general_dilated(
        x, w, window_strides=(stride, stride),
        padding=[(padding, padding), (padding, padding)],
        dimension_numbers=("NHWC", "HWIO", "NHWC"))


def _basic_block_ref(x, p):
    o = jnp.maximum(x * p["bn1_scale"].reshape(1, 1, 1, -1)
                    + p["bn1_shift"].reshape(1, 1, 1, -1), 0.0)
    shortcut = x if p["equal"] else _conv_ref(o, p["w_short"], p["stride"], 0)
    h = _conv_ref(o, p["w1"], p["stride"], 1)
    h = jnp.maximum(h * p["bn2_scale"].reshape(1, 1, 1, -1)
                    + p["bn2_shift"].reshape(1, 1, 1, -1), 0.0)
    h = _conv_ref(h, p["w2"], 1, 1)
    return shortcut + h


# ------------------------------------ main ------------------------------------ #

if __name__ == "__main__":
    key = jax.random.PRNGKey(0)
    kx, kp = jax.random.split(key)

    # Small shapes consistent with NetworkBlock(nb_layers=2, in=4, out=8, stride=2).
    # Note: Cin=4 / Cout=8 pad to 128 lanes (mandatory) so most MXU lanes are
    # wasted at these demo shapes; tune/benchmark at real WRN widths (160..640).
    N, C_IN, H, W = 2, 4, 16, 16
    NB_LAYERS, C_OUT, STRIDE = 2, 8, 2

    x = jax.random.normal(kx, (N, C_IN, H, W), jnp.float32)      # NCHW like PyTorch
    params = init_network_block(kp, NB_LAYERS, C_IN, C_OUT, STRIDE)

    # Reference (plain JAX / XLA conv, f32).
    xr = jnp.transpose(x, (0, 2, 3, 1))
    for p in params:
        xr = _basic_block_ref(xr, p)
    y_ref = jnp.transpose(xr, (0, 3, 1, 2))

    # 1) Exact-path check: f32 MXU operands validate the kernel logic tightly.
    fwd_f32 = jax.jit(lambda inp: network_block_forward(inp, params, jnp.float32))
    y_f32 = jax.block_until_ready(fwd_f32(x))
    assert y_f32.shape == (N, C_OUT, H // STRIDE, W // STRIDE), y_f32.shape
    err_f32 = float(jnp.max(jnp.abs(y_f32 - y_ref)))
    assert jnp.allclose(y_f32, y_ref, atol=1e-4, rtol=1e-4), f"f32 max_err={err_f32}"

    # 2) Performance path: bf16 MXU operands, f32 accumulation (loosened tol).
    fwd = jax.jit(lambda inp: network_block_forward(inp, params, MXU_INPUT_DTYPE))
    y = jax.block_until_ready(fwd(x))
    assert y.shape == (N, C_OUT, H // STRIDE, W // STRIDE), y.shape
    err_bf16 = float(jnp.max(jnp.abs(y - y_ref)))
    ref_scale = float(jnp.max(jnp.abs(y_ref)))
    assert err_bf16 <= 5e-2 * ref_scale + 5e-3, (
        f"bf16 max_err={err_bf16} (ref scale {ref_scale})")

    print("KERNEL_OK")
</pallas_src>

<mosaic_0001>
module attributes {stable_mosaic.version = 11 : i64} {
  func.func @_fused_matmul_kernel(%arg0: i32, %arg1: i32, %arg2: i32, %arg3: memref<64x128xf32, #tpu.memory_space<vmem>>, %arg4: memref<128x128xf32, #tpu.memory_space<vmem>>, %arg5: memref<1x128xf32, #tpu.memory_space<vmem>>, %arg6: memref<64x128xf32, #tpu.memory_space<vmem>>, %arg7: memref<64x128xf32, #tpu.memory_space<vmem>>) attributes {dimension_semantics = [#tpu.dimension_semantics<parallel>, #tpu.dimension_semantics<parallel>, #tpu.dimension_semantics<arbitrary>], iteration_bounds = array<i64: 2, 1, 1>, scalar_prefetch = 0 : i64, scratch_operands = 1 : i64, tpu.core_type = #tpu.core_type<tc>, window_params = [{transform_indices = @transform_0, window_bounds = array<i64: 64, 128>}, {transform_indices = @transform_1, window_bounds = array<i64: 128, 128>}, {transform_indices = @transform_2, window_bounds = array<i64: 1, 128>}, {transform_indices = @transform_3, window_bounds = array<i64: 64, 128>}]} {
    %c0_i32 = arith.constant 0 : i32
    %0 = arith.cmpi eq, %arg2, %c0_i32 : i32
    %1 = arith.extui %0 : i1 to i32
    %c0_i32_0 = arith.constant 0 : i32
    %2 = arith.cmpi ne, %1, %c0_i32_0 : i32
    scf.if %2 {
      %cst_10 = arith.constant 0.000000e+00 : f32
      %12 = vector.broadcast %cst_10 : f32 to vector<64x128xf32>
      %c0_11 = arith.constant 0 : index
      %c0_12 = arith.constant 0 : index
      %13 = vector.load %arg7[%c0_11, %c0_12] : memref<64x128xf32, #tpu.memory_space<vmem>>, vector<64x128xf32>
      tpu.vector_store %arg7[%c0_11, %c0_12], %12 {strides = array<i32>} : memref<64x128xf32, #tpu.memory_space<vmem>>, vector<64x128xf32>,
    } else {
    }
    %c0 = arith.constant 0 : index
    %c0_1 = arith.constant 0 : index
    %3 = vector.load %arg7[%c0, %c0_1] : memref<64x128xf32, #tpu.memory_space<vmem>>, vector<64x128xf32>
    %c0_2 = arith.constant 0 : index
    %c0_3 = arith.constant 0 : index
    %4 = vector.load %arg3[%c0_2, %c0_3] : memref<64x128xf32, #tpu.memory_space<vmem>>, vector<64x128xf32>
    %c0_4 = arith.constant 0 : index
    %c0_5 = arith.constant 0 : index
    %5 = vector.load %arg4[%c0_4, %c0_5] : memref<128x128xf32, #tpu.memory_space<vmem>>, vector<128x128xf32>
    %cst = arith.constant dense<0.000000e+00> : vector<64x128xf32>
    %6 = tpu.matmul %4, %5, %cst {dimension_numbers = #tpu.dot_dimension_numbers<[1], [0], [0], [1], [0, 0, 1, 1], [], []>} : vector<64x128xf32>, vector<128x128xf32>, vector<64x128xf32> -> vector<64x128xf32>
    %7 = arith.addf %3, %6 : vector<64x128xf32>
    %c0_6 = arith.constant 0 : index
    %c0_7 = arith.constant 0 : index
    %8 = vector.load %arg7[%c0_6, %c0_7] : memref<64x128xf32, #tpu.memory_space<vmem>>, vector<64x128xf32>
    tpu.vector_store %arg7[%c0_6, %c0_7], %7 {strides = array<i32>} : memref<64x128xf32, #tpu.memory_space<vmem>>, vector<64x128xf32>,
    %c0_i32_8 = arith.constant 0 : i32
    %9 = arith.cmpi eq, %arg2, %c0_i32_8 : i32
    %10 = arith.extui %9 : i1 to i32
    %c0_i32_9 = arith.constant 0 : i32
    %11 = arith.cmpi ne, %10, %c0_i32_9 : i32
    scf.if %11 {
      %c0_10 = arith.constant 0 : index
      %c0_11 = arith.constant 0 : index
      %12 = vector.load %arg7[%c0_10, %c0_11] : memref<64x128xf32, #tpu.memory_space<vmem>>, vector<64x128xf32>
      %c0_12 = arith.constant 0 : index
      %c0_13 = arith.constant 0 : index
      %13 = vector.load %arg5[%c0_12, %c0_13] : memref<1x128xf32, #tpu.memory_space<vmem>>, vector<1x128xf32>
      %14 = vector.broadcast %13 : vector<1x128xf32> to vector<64x128xf32>
      %15 = arith.addf %12, %14 : vector<64x128xf32>
      %cst_14 = arith.constant 0.000000e+00 : f32
      %16 = vector.broadcast %cst_14 : f32 to vector<64x128xf32>
      %17 = arith.maximumf %15, %16 : vector<64x128xf32>
      %c0_15 = arith.constant 0 : index
      %c0_16 = arith.constant 0 : index
      %18 = vector.load %arg6[%c0_15, %c0_16] : memref<64x128xf32, #tpu.memory_space<vmem>>, vector<64x128xf32>
      tpu.vector_store %arg6[%c0_15, %c0_16], %17 {strides = array<i32>} : memref<64x128xf32, #tpu.memory_space<vmem>>, vector<64x128xf32>,
    } else {
    }
    return
  }
  func.func @transform_0(%arg0: i32, %arg1: i32, %arg2: i32) -> (i32, i32) {
    %c0_i32 = arith.constant 0 : i32
    return %arg0, %arg2 : i32, i32
  }
  func.func @transform_1(%arg0: i32, %arg1: i32, %arg2: i32) -> (i32, i32) {
    %c0_i32 = arith.constant 0 : i32
    return %arg2, %arg1 : i32, i32
  }
  func.func @transform_2(%arg0: i32, %arg1: i32, %arg2: i32) -> (i32, i32) {
    %c0_i32 = arith.constant 0 : i32
    %c0_i32_0 = arith.constant 0 : i32
    return %c0_i32, %arg1 : i32, i32
  }
  func.func @transform_3(%arg0: i32, %arg1: i32, %arg2: i32) -> (i32, i32) {
    %c0_i32 = arith.constant 0 : i32
    return %arg0, %arg1 : i32, i32
  }
}

module attributes {stable_mosaic.version = 11 : i64} {
  func.func @_fused_matmul_kernel(%arg0: i32, %arg1: i32, %arg2: i32, %arg3: memref<64x128xf32, #tpu.memory_space<vmem>>, %arg4: memref<128x128xf32, #tpu.memory_space<vmem>>, %arg5: memref<64x128xf32, #tpu.memory_space<vmem>>, %arg6: memref<64x128xf32, #tpu.memory_space<vmem>>) attributes {dimension_semantics = [#tpu.dimension_semantics<parallel>, #tpu.dimension_semantics<parallel>, #tpu.dimension_semantics<arbitrary>], iteration_bounds = array<i64: 2, 1, 1>, scalar_prefetch = 0 : i64, scratch_operands = 1 : i64, tpu.core_type = #tpu.core_type<tc>, window_params = [{transform_indices = @transform_0, window_bounds = array<i64: 64, 128>}, {transform_indices = @transform_1, window_bounds = array<i64: 128, 128>}, {transform_indices = @transform_2, window_bounds = array<i64: 64, 128>}]} {
    %c0_i32 = arith.constant 0 : i32
    %0 = arith.cmpi eq, %arg2, %c0_i32 : i32
    %1 = arith.extui %0 : i1 to i32
    %c0_i32_0 = arith.constant 0 : i32
    %2 = arith.cmpi ne, %1, %c0_i32_0 : i32
    scf.if %2 {
      %cst_10 = arith.constant 0.000000e+00 : f32
      %12 = vector.broadcast %cst_10 : f32 to vector<64x128xf32>
      %c0_11 = arith.constant 0 : index
      %c0_12 = arith.constant 0 : index
      %13 = vector.load %arg6[%c0_11, %c0_12] : memref<64x128xf32, #tpu.memory_space<vmem>>, vector<64x128xf32>
      tpu.vector_store %arg6[%c0_11, %c0_12], %12 {strides = array<i32>} : memref<64x128xf32, #tpu.memory_space<vmem>>, vector<64x128xf32>,
    } else {
    }
    %c0 = arith.constant 0 : index
    %c0_1 = arith.constant 0 : index
    %3 = vector.load %arg6[%c0, %c0_1] : memref<64x128xf32, #tpu.memory_space<vmem>>, vector<64x128xf32>
    %c0_2 = arith.constant 0 : index
    %c0_3 = arith.constant 0 : index
    %4 = vector.load %arg3[%c0_2, %c0_3] : memref<64x128xf32, #tpu.memory_space<vmem>>, vector<64x128xf32>
    %c0_4 = arith.constant 0 : index
    %c0_5 = arith.constant 0 : index
    %5 = vector.load %arg4[%c0_4, %c0_5] : memref<128x128xf32, #tpu.memory_space<vmem>>, vector<128x128xf32>
    %cst = arith.constant dense<0.000000e+00> : vector<64x128xf32>
    %6 = tpu.matmul %4, %5, %cst {dimension_numbers = #tpu.dot_dimension_numbers<[1], [0], [0], [1], [0, 0, 1, 1], [], []>} : vector<64x128xf32>, vector<128x128xf32>, vector<64x128xf32> -> vector<64x128xf32>
    %7 = arith.addf %3, %6 : vector<64x128xf32>
    %c0_6 = arith.constant 0 : index
    %c0_7 = arith.constant 0 : index
    %8 = vector.load %arg6[%c0_6, %c0_7] : memref<64x128xf32, #tpu.memory_space<vmem>>, vector<64x128xf32>
    tpu.vector_store %arg6[%c0_6, %c0_7], %7 {strides = array<i32>} : memref<64x128xf32, #tpu.memory_space<vmem>>, vector<64x128xf32>,
    %c0_i32_8 = arith.constant 0 : i32
    %9 = arith.cmpi eq, %arg2, %c0_i32_8 : i32
    %10 = arith.extui %9 : i1 to i32
    %c0_i32_9 = arith.constant 0 : i32
    %11 = arith.cmpi ne, %10, %c0_i32_9 : i32
    scf.if %11 {
      %c0_10 = arith.constant 0 : index
      %c0_11 = arith.constant 0 : index
      %12 = vector.load %arg6[%c0_10, %c0_11] : memref<64x128xf32, #tpu.memory_space<vmem>>, vector<64x128xf32>
      %c0_12 = arith.constant 0 : index
      %c0_13 = arith.constant 0 : index
      %13 = vector.load %arg5[%c0_12, %c0_13] : memref<64x128xf32, #tpu.memory_space<vmem>>, vector<64x128xf32>
      tpu.vector_store %arg5[%c0_12, %c0_13], %12 {strides = array<i32>} : memref<64x128xf32, #tpu.memory_space<vmem>>, vector<64x128xf32>,
    } else {
    }
    return
  }
  func.func @transform_0(%arg0: i32, %arg1: i32, %arg2: i32) -> (i32, i32) {
    %c0_i32 = arith.constant 0 : i32
    return %arg0, %arg2 : i32, i32
  }
  func.func @transform_1(%arg0: i32, %arg1: i32, %arg2: i32) -> (i32, i32) {
    %c0_i32 = arith.constant 0 : i32
    return %arg2, %arg1 : i32, i32
  }
  func.func @transform_2(%arg0: i32, %arg1: i32, %arg2: i32) -> (i32, i32) {
    %c0_i32 = arith.constant 0 : i32
    return %arg0, %arg1 : i32, i32
  }
}

module attributes {stable_mosaic.version = 11 : i64} {
  func.func @_fused_matmul_kernel(%arg0: i32, %arg1: i32, %arg2: i32, %arg3: memref<64x128xf32, #tpu.memory_space<vmem>>, %arg4: memref<128x128xf32, #tpu.memory_space<vmem>>, %arg5: memref<64x128xf32, #tpu.memory_space<vmem>>, %arg6: memref<64x128xf32, #tpu.memory_space<vmem>>, %arg7: memref<64x128xf32, #tpu.memory_space<vmem>>) attributes {dimension_semantics = [#tpu.dimension_semantics<parallel>, #tpu.dimension_semantics<parallel>, #tpu.dimension_semantics<arbitrary>], iteration_bounds = array<i64: 2, 1, 1>, scalar_prefetch = 0 : i64, scratch_operands = 1 : i64, tpu.core_type = #tpu.core_type<tc>, window_params = [{transform_indices = @transform_0, window_bounds = array<i64: 64, 128>}, {transform_indices = @transform_1, window_bounds = array<i64: 128, 128>}, {transform_indices = @transform_2, window_bounds = array<i64: 64, 128>}, {transform_indices = @transform_3, window_bounds = array<i64: 64, 128>}]} {
    %c0_i32 = arith.constant 0 : i32
    %0 = arith.cmpi eq, %arg2, %c0_i32 : i32
    %1 = arith.extui %0 : i1 to i32
    %c0_i32_0 = arith.constant 0 : i32
    %2 = arith.cmpi ne, %1, %c0_i32_0 : i32
    scf.if %2 {
      %cst_10 = arith.constant 0.000000e+00 : f32
      %12 = vector.broadcast %cst_10 : f32 to vector<64x128xf32>
      %c0_11 = arith.constant 0 : index
      %c0_12 = arith.constant 0 : index
      %13 = vector.load %arg7[%c0_11, %c0_12] : memref<64x128xf32, #tpu.memory_space<vmem>>, vector<64x128xf32>
      tpu.vector_store %arg7[%c0_11, %c0_12], %12 {strides = array<i32>} : memref<64x128xf32, #tpu.memory_space<vmem>>, vector<64x128xf32>,
    } else {
    }
    %c0 = arith.constant 0 : index
    %c0_1 = arith.constant 0 : index
    %3 = vector.load %arg7[%c0, %c0_1] : memref<64x128xf32, #tpu.memory_space<vmem>>, vector<64x128xf32>
    %c0_2 = arith.constant 0 : index
    %c0_3 = arith.constant 0 : index
    %4 = vector.load %arg3[%c0_2, %c0_3] : memref<64x128xf32, #tpu.memory_space<vmem>>, vector<64x128xf32>
    %c0_4 = arith.constant 0 : index
    %c0_5 = arith.constant 0 : index
    %5 = vector.load %arg4[%c0_4, %c0_5] : memref<128x128xf32, #tpu.memory_space<vmem>>, vector<128x128xf32>
    %cst = arith.constant dense<0.000000e+00> : vector<64x128xf32>
    %6 = tpu.matmul %4, %5, %cst {dimension_numbers = #tpu.dot_dimension_numbers<[1], [0], [0], [1], [0, 0, 1, 1], [], []>} : vector<64x128xf32>, vector<128x128xf32>, vector<64x128xf32> -> vector<64x128xf32>
    %7 = arith.addf %3, %6 : vector<64x128xf32>
    %c0_6 = arith.constant 0 : index
    %c0_7 = arith.constant 0 : index
    %8 = vector.load %arg7[%c0_6, %c0_7] : memref<64x128xf32, #tpu.memory_space<vmem>>, vector<64x128xf32>
    tpu.vector_store %arg7[%c0_6, %c0_7], %7 {strides = array<i32>} : memref<64x128xf32, #tpu.memory_space<vmem>>, vector<64x128xf32>,
    %c0_i32_8 = arith.constant 0 : i32
    %9 = arith.cmpi eq, %arg2, %c0_i32_8 : i32
    %10 = arith.extui %9 : i1 to i32
    %c0_i32_9 = arith.constant 0 : i32
    %11 = arith.cmpi ne, %10, %c0_i32_9 : i32
    scf.if %11 {
      %c0_10 = arith.constant 0 : index
      %c0_11 = arith.constant 0 : index
      %12 = vector.load %arg7[%c0_10, %c0_11] : memref<64x128xf32, #tpu.memory_space<vmem>>, vector<64x128xf32>
      %c0_12 = arith.constant 0 : index
      %c0_13 = arith.constant 0 : index
      %13 = vector.load %arg5[%c0_12, %c0_13] : memref<64x128xf32, #tpu.memory_space<vmem>>, vector<64x128xf32>
      %14 = arith.addf %12, %13 : vector<64x128xf32>
      %c0_14 = arith.constant 0 : index
      %c0_15 = arith.constant 0 : index
      %15 = vector.load %arg6[%c0_14, %c0_15] : memref<64x128xf32, #tpu.memory_space<vmem>>, vector<64x128xf32>
      tpu.vector_store %arg6[%c0_14, %c0_15], %14 {strides = array<i32>} : memref<64x128xf32, #tpu.memory_space<vmem>>, vector<64x128xf32>,
    } else {
    }
    return
  }
  func.func @transform_0(%arg0: i32, %arg1: i32, %arg2: i32) -> (i32, i32) {
    %c0_i32 = arith.constant 0 : i32
    return %arg0, %arg2 : i32, i32
  }
  func.func @transform_1(%arg0: i32, %arg1: i32, %arg2: i32) -> (i32, i32) {
    %c0_i32 = arith.constant 0 : i32
    return %arg2, %arg1 : i32, i32
  }
  func.func @transform_2(%arg0: i32, %arg1: i32, %arg2: i32) -> (i32, i32) {
    %c0_i32 = arith.constant 0 : i32
    return %arg0, %arg1 : i32, i32
  }
  func.func @transform_3(%arg0: i32, %arg1: i32, %arg2: i32) -> (i32, i32) {
    %c0_i32 = arith.constant 0 : i32
    return %arg0, %arg1 : i32, i32
  }
}

</mosaic_0001>

<llo_original>
// kernel: _lambda_.5
$region0: #{_lambda_.5}
  #allocation0 [shape = 'u32[]', space=smem, size = 0x4, offset = 0x4, fixed_abs, tag = 'smem constant byte address 0x4 - core index']
  #allocation1 [shape = 'u32[144,128]{1,0:T(1,128)}', space=vmem, size = 0x12000, scoped, tag = 'internal scratch']
  #allocation2 [shape = 'f32[64,128]{1,0:T(8,128)}', space=vmem, size = 0x8000, scoped, tag = 'scratch operand']
  %s0 = inlined_call_operand.vmem [shape: f32[128,128], index: 0, kind: input, shape index: {}]
  %s1 = inlined_call_operand.vmem [shape: f32[128,128], index: 1, kind: input, shape index: {}]
  %s2 = inlined_call_operand.vmem [shape: f32[128,128], index: 2, kind: output, shape index: {}]
  %s3 = sld [smem:[#allocation0]]
  $region49: #{_lambda_.5} parent=0
    _
  %s5 = ssub.s32 1, %s3
  %s6 = scalar_select 0, %s5, %s3
  loop: start=0, step=1, limit=4
  $region2: #{_lambda_.5} parent=0 // loop_pre_header
    _
  $region3: #{_lambda_.5} parent=0 // loop_header
    %s8 = sphi 0, %s12
    %p9 = scmp.ge.s32.totalorder %s8, 4
    %s15 = sphi 0, %s34
    %s16 = sphi 0, %s30
    %s17 = sphi 0, %s26
    %s18 = sphi 0, %s15
    %s19 = sphi 0, %s16
    %s20 = sphi 0, %s17
    %s21 = sphi 0, %s18
    %s22 = sphi 0, %s19
    %s23 = sphi 0, %s20
    %s39 = sphi 0, %s41
    %s42 = sphi 0, %s39
    %s43 = sphi 0, %s42
    %s59 = sphi 0, %s43
    %s67 = sphi 0, %s69
    %s70 = sphi 0, %s67
    %s71 = sphi 0, %s70
    %s87 = sphi 0, %s71
    %s95 = sphi 0, %s97
    %s98 = sphi 0, %s95
    %s99 = sphi 0, %s98
    %s115 = sphi 0, %s99
  $region4: #{_lambda_.5} parent=0 // loop_header_branch
    %11 = sbr.rel (%p9) target = $region8
  $region5: #{_lambda_.5} parent=0 // loop_body
    %s13 = ssub.s32 %s8, 1
    %s14 = ssub.s32 %s8, 2
    %s24 = sadd.s32 1, %s17
    %p25 = scmp.ge.s32.totalorder %s24, 1
    %s26 = scalar_select %p25, 0, %s24
    %s27 = sadd.s32 1, %s16
    %s28 = scalar_select %p25, %s27, %s16
    %p29 = scmp.ge.s32.totalorder %s28, 1
    %s30 = scalar_select %p29, 0, %s28
    %s31 = sadd.s32 1, %s15
    %s32 = scalar_select %p29, %s31, %s15
    %p33 = scmp.ge.s32.totalorder %s32, 2
    %s34 = scalar_select %p33, 0, %s32
    %s35 = ssub.s32 %s15, %s34
    %s36 = ssub.s32 %s17, %s26
    %s37 = sor.u32 %s35, %s36
    %p38 = scmp.eq.s32.totalorder %s37, 0
    %s40 = sadd.s32 %s39, 1
    %s41 = scalar_select %p38, %s39, %s40
    %p44 = pneg %p38
    %p45 = scmp.eq.s32.totalorder %s8, 1
    %p46 = por %p44, %p45
    %p47 = scmp.ne.s32.totalorder %s39, %s42
    %p48 = scmp.eq.s32.totalorder %s8, 0
    %p49 = por %p47, %p48
    %p50 = scmp.ne.s32.totalorder %s39, %s42
    %p51 = scmp.eq.s32.totalorder %s13, 1
    %p52 = por %p50, %p51
    %p53 = scmp.ne.s32.totalorder %s42, %s43
    %p54 = scmp.eq.s32.totalorder %s13, 0
    %p55 = por %p53, %p54
    %p56 = scmp.ne.s32.totalorder %s42, %s43
    %p57 = scmp.eq.s32.totalorder %s14, 1
    %p58 = por %p56, %p57
    %p60 = scmp.ne.s32.totalorder %s43, %s59
    %p61 = scmp.eq.s32.totalorder %s14, 0
    %p62 = por %p60, %p61
    %s63 = ssub.s32 %s17, %s26
    %s64 = ssub.s32 %s16, %s30
    %s65 = sor.u32 %s63, %s64
    %p66 = scmp.eq.s32.totalorder %s65, 0
    %s68 = sadd.s32 %s67, 1
    %s69 = scalar_select %p66, %s67, %s68
    %p72 = pneg %p66
    %p73 = scmp.eq.s32.totalorder %s8, 1
    %p74 = por %p72, %p73
    %p75 = scmp.ne.s32.totalorder %s67, %s70
    %p76 = scmp.eq.s32.totalorder %s8, 0
    %p77 = por %p75, %p76
    %p78 = scmp.ne.s32.totalorder %s67, %s70
    %p79 = scmp.eq.s32.totalorder %s13, 1
    %p80 = por %p78, %p79
    %p81 = scmp.ne.s32.totalorder %s70, %s71
    %p82 = scmp.eq.s32.totalorder %s13, 0
    %p83 = por %p81, %p82
    %p84 = scmp.ne.s32.totalorder %s70, %s71
    %p85 = scmp.eq.s32.totalorder %s14, 1
    %p86 = por %p84, %p85
    %p88 = scmp.ne.s32.totalorder %s71, %s87
    %p89 = scmp.eq.s32.totalorder %s14, 0
    %p90 = por %p88, %p89
    %s91 = ssub.s32 %s15, %s34
    %s92 = ssub.s32 %s16, %s30
    %s93 = sor.u32 %s91, %s92
    %p94 = scmp.eq.s32.totalorder %s93, 0
    %s96 = sadd.s32 %s95, 1
    %s97 = scalar_select %p94, %s95, %s96
    %p100 = pneg %p94
    %p101 = scmp.eq.s32.totalorder %s8, 1
    %p102 = por %p100, %p101
    %p103 = scmp.ne.s32.totalorder %s95, %s98
    %p104 = scmp.eq.s32.totalorder %s8, 0
    %p105 = por %p103, %p104
    %p106 = scmp.ne.s32.totalorder %s95, %s98
    %p107 = scmp.eq.s32.totalorder %s13, 1
    %p108 = por %p106, %p107
    %p109 = scmp.ne.s32.totalorder %s98, %s99
    %p110 = scmp.eq.s32.totalorder %s13, 0
    %p111 = por %p109, %p110
    %p112 = scmp.ne.s32.totalorder %s98, %s99
    %p113 = scmp.eq.s32.totalorder %s14, 1
    %p114 = por %p112, %p113
    %p116 = scmp.ne.s32.totalorder %s99, %s115
    %p117 = scmp.eq.s32.totalorder %s14, 0
    %p118 = por %p116, %p117
    %p119 = scmp.le.s32.totalorder 1, %s8
    %p120 = scmp.lt.s32.totalorder %s8, 3
    %p121 = pnand %p119, %p120
    %p122 = pneg %p121
    // Predicated region
    $region9: #{_lambda_.5} parent=5 // pred_check
      _
    $region10: #{_lambda_.5} parent=5 // pred_check_branch
      %124 = sbr.rel (%p121) target = $region12
    $region11: #{_lambda_.5} parent=5 // pred_region
      %s125 = ssub.s32 %s8, 1
      // Predicated region
      $region13: #{_lambda_.5} parent=11 // pred_check
        %p126 = pneg %p83
      $region14: #{_lambda_.5} parent=11 // pred_check_branch
        %128 = sbr.rel (%p126) target = $region16
      $region15: #{_lambda_.5} parent=11 // pred_region
        %s129 = smul.u32 16, %s20
        %p130 = scmp.lt.s32.totalorder %s129, 15
        %s131 = scalar_select %p130, %s129, 15
        %p132 = scmp.lt.s32.totalorder %s19, 0
        %s133 = scalar_select %p132, %s19, 0
        %s134 = sadd.s32 %s133, %s131
        %s135 = smul.addr %s134, 8
        %s136 = scalar_lea.vmem %s1, %s135
        %s137 = smul.u32 16, %s20
      $region16: #{_lambda_.5} parent=11 // pred_fallthru
        _
    $region12: #{_lambda_.5} parent=5 // pred_fallthru
      _
    %p138 = scmp.lt.s32.totalorder %s8, 2
    // Predicated region
    $region17: #{_lambda_.5} parent=5 // pred_check
      %p139 = pneg %p138
    $region18: #{_lambda_.5} parent=5 // pred_check_branch
      %141 = sbr.rel (%p139) target = $region20
    $region19: #{_lambda_.5} parent=5 // pred_region
      // Predicated region
      $region21: #{_lambda_.5} parent=19 // pred_check
        %p142 = pneg %p49
      $region22: #{_lambda_.5} parent=19 // pred_check_branch
        %144 = sbr.rel (%p142) target = $region24
      $region23: #{_lambda_.5} parent=19 // pred_region
        %s145 = smul.u32 8, %s15
        %p146 = scmp.lt.s32.totalorder %s145, 15
        %s147 = scalar_select %p146, %s145, 15
        %p148 = scmp.lt.s32.totalorder %s17, 0
        %s149 = scalar_select %p148, %s17, 0
        %s150 = sadd.s32 %s149, %s147
        %s151 = smul.addr %s150, 8
        %s152 = scalar_lea.vmem %s0, %s151
        %s153 = smul.u32 8, %s15
      $region24: #{_lambda_.5} parent=19 // pred_fallthru
        _
    $region20: #{_lambda_.5} parent=5 // pred_fallthru
      _
    %p154 = scmp.le.s32.totalorder 1, %s8
    %p155 = scmp.lt.s32.totalorder %s8, 3
    %p156 = pnand %p154, %p155
    %p157 = pneg %p156
    // Predicated region
    $region25: #{_lambda_.5} parent=5 // pred_check
      _
    $region26: #{_lambda_.5} parent=5 // pred_check_branch
      %159 = sbr.rel (%p156) target = $region28
    $region27: #{_lambda_.5} parent=5 // pred_region
      %s160 = ssub.s32 %s8, 1
      %s161 = smul.u32 8, %s18
      %p162 = scmp.lt.s32.totalorder %s161, 15
      %s163 = scalar_select %p162, %s161, 15
      %p164 = scmp.lt.s32.totalorder %s20, 0
      %s165 = scalar_select %p164, %s20, 0
      %s166 = sadd.s32 %s165, %s163
      %s167 = smul.addr %s166, 8
      %s168 = scalar_lea.vmem %s0, %s167
      %p169 = pneg %p55
      %p170 = pneg %p52
      %s171 = smul.u32 16, %s20
      %p172 = scmp.lt.s32.totalorder %s171, 15
      %s173 = scalar_select %p172, %s171, 15
      %p174 = scmp.lt.s32.totalorder %s19, 0
      %s175 = scalar_select %p174, %s19, 0
      %s176 = sadd.s32 %s175, %s173
      %s177 = smul.addr %s176, 8
      %s178 = scalar_lea.vmem %s1, %s177
      %p179 = pneg %p83
      %p180 = pneg %p80
      %p181 = pneg %p111
      %p182 = pneg %p108
      %s183 = smul.u32 8, %s18
      %p184 = scmp.lt.s32.totalorder %s183, 15
      %s185 = scalar_select %p184, %s183, 15
      %p186 = scmp.lt.s32.totalorder %s19, 0
      %s187 = scalar_select %p186, %s19, 0
      %s188 = sadd.s32 %s187, %s185
      %s189 = smul.addr %s188, 8
      %s190 = scalar_lea.vmem %s2, %s189
      %s191 = smul.u32 8, %s18
      %p192 = scmp.lt.s32.totalorder %s191, 15
      %s193 = scalar_select %p192, %s191, 15
      %p194 = scmp.lt.s32.totalorder %s20, 0
      %s195 = scalar_select %p194, %s20, 0
      %s196 = sadd.s32 %s195, %s193
      %s197 = smul.addr %s196, 8
      %s198 = scalar_lea.vmem %s0, %s197
      %s199 = smul.u32 8, %s18
      %s200 = smul.u32 16, %s20
      %p201 = scmp.lt.s32.totalorder %s200, 15
      %s202 = scalar_select %p201, %s200, 15
      %p203 = scmp.lt.s32.totalorder %s19, 0
      %s204 = scalar_select %p203, %s19, 0
      %s205 = sadd.s32 %s204, %s202
      %s206 = smul.addr %s205, 8
      %s207 = scalar_lea.vmem %s1, %s206
      %s208 = smul.u32 16, %s20
      %s209 = smul.u32 8, %s18
      %p210 = scmp.lt.s32.totalorder %s209, 15
      %s211 = scalar_select %p210, %s209, 15
      %p212 = scmp.lt.s32.totalorder %s19, 0
      %s213 = scalar_select %p212, %s19, 0
      %s214 = sadd.s32 %s213, %s211
      %s215 = smul.addr %s214, 8
      %s216 = scalar_lea.vmem %s2, %s215
      %s217 = smul.u32 8, %s18
      %p218 = scmp.eq.s32.totalorder %s20, 0
      // Predicated region
      $region29: #{_lambda_.5} parent=27 // pred_check
        %p219 = pneg %p218
      $region30: #{_lambda_.5} parent=27 // pred_check_branch
        %221 = sbr.rel (%p219) target = $region32
      $region31: #{_lambda_.5} parent=27 // pred_region
        %222 = vst [vmem:[#allocation2] sm:$0xff] 0.0
        %223 = vst [vmem:[#allocation2 + $0x8] sm:$0xff] 0.0
        %224 = vst [vmem:[#allocation2 + $0x10] sm:$0xff] 0.0
        %225 = vst [vmem:[#allocation2 + $0x18] sm:$0xff] 0.0
        %226 = vst [vmem:[#allocation2 + $0x20] sm:$0xff] 0.0
        %227 = vst [vmem:[#allocation2 + $0x28] sm:$0xff] 0.0
        %228 = vst [vmem:[#allocation2 + $0x30] sm:$0xff] 0.0
        %229 = vst [vmem:[#allocation2 + $0x38] sm:$0xff] 0.0
      $region32: #{_lambda_.5} parent=27 // pred_fallthru
        _
      %v230 = vld [vmem:[#allocation2] sm:$0xff]
      %v231 = vld [vmem:[#allocation2 + $0x8] sm:$0xff]
      %v232 = vld [vmem:[#allocation2 + $0x10] sm:$0xff]
      %v233 = vld [vmem:[#allocation2 + $0x18] sm:$0xff]
      %v234 = vld [vmem:[#allocation2 + $0x20] sm:$0xff]
      %v235 = vld [vmem:[#allocation2 + $0x28] sm:$0xff]
      %v236 = vld [vmem:[#allocation2 + $0x30] sm:$0xff]
      %v237 = vld [vmem:[#allocation2 + $0x38] sm:$0xff]
      %v238 = vld [vmem:[%s198] sm:$0xff]
      %v239 = vld [vmem:[%s198 + $0x8] sm:$0xff]
      %v240 = vld [vmem:[%s198 + $0x10] sm:$0xff]
      %v241 = vld [vmem:[%s198 + $0x18] sm:$0xff]
      %v242 = vld [vmem:[%s198 + $0x20] sm:$0xff]
      %v243 = vld [vmem:[%s198 + $0x28] sm:$0xff]
      %v244 = vld [vmem:[%s198 + $0x30] sm:$0xff]
      %v245 = vld [vmem:[%s198 + $0x38] sm:$0xff]
      %v246 = vld [vmem:[%s207] sm:$0xff]
      %v247 = vld [vmem:[%s207 + $0x8] sm:$0xff]
      %v248 = vld [vmem:[%s207 + $0x10] sm:$0xff]
      %v249 = vld [vmem:[%s207 + $0x18] sm:$0xff]
      %v250 = vld [vmem:[%s207 + $0x20] sm:$0xff]
      %v251 = vld [vmem:[%s207 + $0x28] sm:$0xff]
      %v252 = vld [vmem:[%s207 + $0x30] sm:$0xff]
      %v253 = vld [vmem:[%s207 + $0x38] sm:$0xff]
      %v254 = vld [vmem:[%s207 + $0x40] sm:$0xff]
      %v255 = vld [vmem:[%s207 + $0x48] sm:$0xff]
      %v256 = vld [vmem:[%s207 + $0x50] sm:$0xff]
      %v257 = vld [vmem:[%s207 + $0x58] sm:$0xff]
      %v258 = vld [vmem:[%s207 + $0x60] sm:$0xff]
      %v259 = vld [vmem:[%s207 + $0x68] sm:$0xff]
      %v260 = vld [vmem:[%s207 + $0x70] sm:$0xff]
      %v261 = vld [vmem:[%s207 + $0x78] sm:$0xff]
      %262 = vmatprep.subr.mxu0 0.0
      %263 = vmatpush1.msra.mxu0 %v246
      %264 = vmatprep.subr.mxu0 0.0
      %265 = vmatpush1.msra.mxu0 %v247
      %266 = vmatprep.subr.mxu0 0.0
      %267 = vmatpush1.msra.mxu0 %v248
      %268 = vmatprep.subr.mxu0 0.0
      %269 = vmatpush1.msra.mxu0 %v249
      %270 = vmatprep.subr.mxu0 0.0
      %271 = vmatpush1.msra.mxu0 %v250
      %272 = vmatprep.subr.mxu0 0.0
      %273 = vmatpush1.msra.mxu0 %v251
      %274 = vmatprep.subr.mxu0 0.0
      %275 = vmatpush1.msra.mxu0 %v252
      %276 = vmatprep.subr.mxu0 0.0
      %277 = vmatpush1.msra.mxu0 %v253
      %278 = vmatprep.subr.mxu0 0.0
      %279 = vmatpush1.msra.mxu0 %v254
      %280 = vmatprep.subr.mxu0 0.0
      %281 = vmatpush1.msra.mxu0 %v255
      %282 = vmatprep.subr.mxu0 0.0
      %283 = vmatpush1.msra.mxu0 %v256
      %284 = vmatprep.subr.mxu0 0.0
      %285 = vmatpush1.msra.mxu0 %v257
      %286 = vmatprep.subr.mxu0 0.0
      %287 = vmatpush1.msra.mxu0 %v258
      %288 = vmatprep.subr.mxu0 0.0
      %289 = vmatpush1.msra.mxu0 %v259
      %290 = vmatprep.subr.mxu0 0.0
      %291 = vmatpush1.msra.mxu0 %v260
      %292 = vmatprep.subr.mxu0 0.0
      %293 = vmatpush1.msra.mxu0 %v261
      %294 = vmatprep.subr.mxu0 0.0
      %295 = vmatpush1.msra.mxu0 0.0
      %296 = vmatprep.subr.mxu0 0.0
      %297 = vmatpush1.msra.mxu0 0.0
      %298 = vmatprep.subr.mxu0 0.0
      %299 = vmatpush1.msra.mxu0 0.0
      %300 = vmatprep.subr.mxu0 0.0
      %301 = vmatpush1.msra.mxu0 0.0
      %302 = vmatprep.subr.mxu0 0.0
      %303 = vmatpush1.msra.mxu0 0.0
      %304 = vmatprep.subr.mxu0 0.0
      %305 = vmatpush1.msra.mxu0 0.0
      %306 = vmatprep.subr.mxu0 0.0
      %307 = vmatpush1.msra.mxu0 0.0
      %308 = vmatprep.subr.mxu0 0.0
      %309 = vmatpush1.msra.mxu0 0.0
      %310 = vmatprep.subr.mxu0 0.0
      %311 = vmatpush1.msra.mxu0 0.0
      %312 = vmatprep.subr.mxu0 0.0
      %313 = vmatpush1.msra.mxu0 0.0
      %314 = vmatprep.subr.mxu0 0.0
      %315 = vmatpush1.msra.mxu0 0.0
      %316 = vmatprep.subr.mxu0 0.0
      %317 = vmatpush1.msra.mxu0 0.0
      %318 = vmatprep.subr.mxu0 0.0
      %319 = vmatpush1.msra.mxu0 0.0
      %320 = vmatprep.subr.mxu0 0.0
      %321 = vmatpush1.msra.mxu0 0.0
      %322 = vmatprep.subr.mxu0 0.0
      %323 = vmatpush1.msra.mxu0 0.0
      %324 = vmatprep.subr.mxu0 0.0
      %325 = vmatpush1.msra.mxu0 0.0
      %326 = vmatprep.mubr.f32.mxu0 0.0
      %327 = vmatmul.mubr.f32.gmra.mrb[0].mxu0 %v238
      %v328 = vpop.f32.mrb[0].mxu0
      %v329 = vadd.f32 0.0, %v328
      %v330 = vpop.f32.mrb[0].mxu0
      %331 = vmatprep.mubr.f32.mxu0 0.0
      %332 = vmatmul.mubr.f32.gmra.mrb[0].mxu0 %v239
      %v333 = vpop.f32.mrb[0].mxu0
      %v334 = vadd.f32 0.0, %v333
      %v335 = vpop.f32.mrb[0].mxu0
      %336 = vmatprep.mubr.f32.mxu0 0.0
      %337 = vmatmul.mubr.f32.gmra.mrb[0].mxu0 %v240
      %v338 = vpop.f32.mrb[0].mxu0
      %v339 = vadd.f32 0.0, %v338
      %v340 = vpop.f32.mrb[0].mxu0
      %341 = vmatprep.mubr.f32.mxu0 0.0
      %342 = vmatmul.mubr.f32.gmra.mrb[0].mxu0 %v241
      %v343 = vpop.f32.mrb[0].mxu0
      %v344 = vadd.f32 0.0, %v343
      %v345 = vpop.f32.mrb[0].mxu0
      %346 = vmatprep.mubr.f32.mxu0 0.0
      %347 = vmatmul.mubr.f32.gmra.mrb[0].mxu0 %v242
      %v348 = vpop.f32.mrb[0].mxu0
      %v349 = vadd.f32 0.0, %v348
      %v350 = vpop.f32.mrb[0].mxu0
      %351 = vmatprep.mubr.f32.mxu0 0.0
      %352 = vmatmul.mubr.f32.gmra.mrb[0].mxu0 %v243
      %v353 = vpop.f32.mrb[0].mxu0
      %v354 = vadd.f32 0.0, %v353
      %v355 = vpop.f32.mrb[0].mxu0
      %356 = vmatprep.mubr.f32.mxu0 0.0
      %357 = vmatmul.mubr.f32.gmra.mrb[0].mxu0 %v244
      %v358 = vpop.f32.mrb[0].mxu0
      %v359 = vadd.f32 0.0, %v358
      %v360 = vpop.f32.mrb[0].mxu0
      %361 = vmatprep.mubr.f32.mxu0 0.0
      %362 = vmatmul.mubr.f32.gmra.mrb[0].mxu0 %v245
      %v363 = vpop.f32.mrb[0].mxu0
      %v364 = vadd.f32 0.0, %v363
      %v365 = vpop.f32.mrb[0].mxu0
      %366 = vdwg.mxu0
      %v367 = vadd.f32 %v230, %v329
      %v368 = vadd.f32 %v231, %v334
      %v369 = vadd.f32 %v232, %v339
      %v370 = vadd.f32 %v233, %v344
      %v371 = vadd.f32 %v234, %v349
      %v372 = vadd.f32 %v235, %v354
      %v373 = vadd.f32 %v236, %v359
      %v374 = vadd.f32 %v237, %v364
      %375 = vst [vmem:[#allocation2] sm:$0xff] %v367
      %376 = vst [vmem:[#allocation2 + $0x8] sm:$0xff] %v368
      %377 = vst [vmem:[#allocation2 + $0x10] sm:$0xff] %v369
      %378 = vst [vmem:[#allocation2 + $0x18] sm:$0xff] %v370
      %379 = vst [vmem:[#allocation2 + $0x20] sm:$0xff] %v371
      %380 = vst [vmem:[#allocation2 + $0x28] sm:$0xff] %v372
      %381 = vst [vmem:[#allocation2 + $0x30] sm:$0xff] %v373
      %382 = vst [vmem:[#allocation2 + $0x38] sm:$0xff] %v374
      // Predicated region
      $region33: #{_lambda_.5} parent=27 // pred_check
        %p383 = pneg %p218
      $region34: #{_lambda_.5} parent=27 // pred_check_branch
        %385 = sbr.rel (%p383) target = $region36
      $region35: #{_lambda_.5} parent=27 // pred_region
        %v386 = vld [vmem:[#allocation2] sm:$0xff]
        %v387 = vld [vmem:[#allocation2 + $0x8] sm:$0xff]
        %v388 = vld [vmem:[#allocation2 + $0x10] sm:$0xff]
        %v389 = vld [vmem:[#allocation2 + $0x18] sm:$0xff]
        %v390 = vld [vmem:[#allocation2 + $0x20] sm:$0xff]
        %v391 = vld [vmem:[#allocation2 + $0x28] sm:$0xff]
        %v392 = vld [vmem:[#allocation2 + $0x30] sm:$0xff]
        %v393 = vld [vmem:[#allocation2 + $0x38] sm:$0xff]
        %394 = vst [vmem:[%s216] sm:$0xff] %v386
        %395 = vst [vmem:[%s216 + $0x8] sm:$0xff] %v387
        %396 = vst [vmem:[%s216 + $0x10] sm:$0xff] %v388
        %397 = vst [vmem:[%s216 + $0x18] sm:$0xff] %v389
        %398 = vst [vmem:[%s216 + $0x20] sm:$0xff] %v390
        %399 = vst [vmem:[%s216 + $0x28] sm:$0xff] %v391
        %400 = vst [vmem:[%s216 + $0x30] sm:$0xff] %v392
        %401 = vst [vmem:[%s216 + $0x38] sm:$0xff] %v393
      $region36: #{_lambda_.5} parent=27 // pred_fallthru
        _
      %s402 = smul.u32 8, %s18
      %p403 = scmp.lt.s32.totalorder %s402, 15
      %s404 = scalar_select %p403, %s402, 15
      %p405 = scmp.lt.s32.totalorder %s19, 0
      %s406 = scalar_select %p405, %s19, 0
      %s407 = sadd.s32 %s406, %s404
      %s408 = smul.addr %s407, 8
      %s409 = scalar_lea.vmem %s2, %s408
      // Predicated region
      $region37: #{_lambda_.5} parent=27 // pred_check
        %p410 = pneg %p108
      $region38: #{_lambda_.5} parent=27 // pred_check_branch
        %412 = sbr.rel (%p410) target = $region40
      $region39: #{_lambda_.5} parent=27 // pred_region
        %s413 = smul.u32 8, %s18
      $region40: #{_lambda_.5} parent=27 // pred_fallthru
        _
    $region28: #{_lambda_.5} parent=5 // pred_fallthru
      _
    %p414 = scmp.le.s32.totalorder 2, %s8
    // Predicated region
    $region41: #{_lambda_.5} parent=5 // pred_check
      %p415 = pneg %p414
    $region42: #{_lambda_.5} parent=5 // pred_check_branch
      %417 = sbr.rel (%p415) target = $region44
    $region43: #{_lambda_.5} parent=5 // pred_region
      %s418 = ssub.s32 %s8, 2
      // Predicated region
      $region45: #{_lambda_.5} parent=43 // pred_check
        %p419 = pneg %p114
      $region46: #{_lambda_.5} parent=43 // pred_check_branch
        %421 = sbr.rel (%p419) target = $region48
      $region47: #{_lambda_.5} parent=43 // pred_region
        %s422 = smul.u32 8, %s21
        %p423 = scmp.lt.s32.totalorder %s422, 15
        %s424 = scalar_select %p423, %s422, 15
        %p425 = scmp.lt.s32.totalorder %s22, 0
        %s426 = scalar_select %p425, %s22, 0
        %s427 = sadd.s32 %s426, %s424
        %s428 = smul.addr %s427, 8
        %s429 = scalar_lea.vmem %s2, %s428
      $region48: #{_lambda_.5} parent=43 // pred_fallthru
        _
    $region44: #{_lambda_.5} parent=5 // pred_fallthru
      _
  $region6: #{_lambda_.5} parent=0 // loop_footer
    %s12 = sadd.s32 1, %s8
  $region7: #{_lambda_.5} parent=0 // loop_footer_branch
    %7 = sbr.rel target = $region3
  $region8: #{_lambda_.5} parent=0 // loop_exit
    _

// kernel: _lambda_.6
$region0: #{_lambda_.6}
  #allocation0 [shape = 'u32[]', space=smem, size = 0x4, offset = 0x4, fixed_abs, tag = 'smem constant byte address 0x4 - core index']
  #allocation1 [shape = 'u32[144,128]{1,0:T(1,128)}', space=vmem, size = 0x12000, scoped, tag = 'internal scratch']
  #allocation2 [shape = 'f32[64,128]{1,0:T(8,128)}', space=vmem, size = 0x8000, scoped, tag = 'scratch operand']
  %s0 = inlined_call_operand.vmem [shape: f32[128,128], index: 0, kind: input, shape index: {}]
  %s1 = inlined_call_operand.vmem [shape: f32[128,128], index: 1, kind: input, shape index: {}]
  %s2 = inlined_call_operand.vmem [shape: f32[1,128], index: 2, kind: input, shape index: {}]
  %s3 = inlined_call_operand.vmem [shape: f32[128,128], index: 3, kind: output, shape index: {}]
  %s4 = sld [smem:[#allocation0]]
  $region53: #{_lambda_.6} parent=0
    _
  %s6 = ssub.s32 1, %s4
  %s7 = scalar_select 0, %s6, %s4
  loop: start=0, step=1, limit=4
  $region2: #{_lambda_.6} parent=0 // loop_pre_header
    _
  $region3: #{_lambda_.6} parent=0 // loop_header
    %s9 = sphi 0, %s13
    %p10 = scmp.ge.s32.totalorder %s9, 4
    %s16 = sphi 0, %s35
    %s17 = sphi 0, %s31
    %s18 = sphi 0, %s27
    %s19 = sphi 0, %s16
    %s20 = sphi 0, %s17
    %s21 = sphi 0, %s18
    %s22 = sphi 0, %s19
    %s23 = sphi 0, %s20
    %s24 = sphi 0, %s21
    %s40 = sphi 0, %s42
    %s43 = sphi 0, %s40
    %s44 = sphi 0, %s43
    %s60 = sphi 0, %s44
    %s68 = sphi 0, %s70
    %s71 = sphi 0, %s68
    %s72 = sphi 0, %s71
    %s88 = sphi 0, %s72
    %s94 = sphi 0, %s96
    %s97 = sphi 0, %s94
    %s98 = sphi 0, %s97
    %s114 = sphi 0, %s98
    %s122 = sphi 0, %s124
    %s125 = sphi 0, %s122
    %s126 = sphi 0, %s125
    %s142 = sphi 0, %s126
  $region4: #{_lambda_.6} parent=0 // loop_header_branch
    %12 = sbr.rel (%p10) target = $region8
  $region5: #{_lambda_.6} parent=0 // loop_body
    %s14 = ssub.s32 %s9, 1
    %s15 = ssub.s32 %s9, 2
    %s25 = sadd.s32 1, %s18
    %p26 = scmp.ge.s32.totalorder %s25, 1
    %s27 = scalar_select %p26, 0, %s25
    %s28 = sadd.s32 1, %s17
    %s29 = scalar_select %p26, %s28, %s17
    %p30 = scmp.ge.s32.totalorder %s29, 1
    %s31 = scalar_select %p30, 0, %s29
    %s32 = sadd.s32 1, %s16
    %s33 = scalar_select %p30, %s32, %s16
    %p34 = scmp.ge.s32.totalorder %s33, 2
    %s35 = scalar_select %p34, 0, %s33
    %s36 = ssub.s32 %s16, %s35
    %s37 = ssub.s32 %s18, %s27
    %s38 = sor.u32 %s36, %s37
    %p39 = scmp.eq.s32.totalorder %s38, 0
    %s41 = sadd.s32 %s40, 1
    %s42 = scalar_select %p39, %s40, %s41
    %p45 = pneg %p39
    %p46 = scmp.eq.s32.totalorder %s9, 1
    %p47 = por %p45, %p46
    %p48 = scmp.ne.s32.totalorder %s40, %s43
    %p49 = scmp.eq.s32.totalorder %s9, 0
    %p50 = por %p48, %p49
    %p51 = scmp.ne.s32.totalorder %s40, %s43
    %p52 = scmp.eq.s32.totalorder %s14, 1
    %p53 = por %p51, %p52
    %p54 = scmp.ne.s32.totalorder %s43, %s44
    %p55 = scmp.eq.s32.totalorder %s14, 0
    %p56 = por %p54, %p55
    %p57 = scmp.ne.s32.totalorder %s43, %s44
    %p58 = scmp.eq.s32.totalorder %s15, 1
    %p59 = por %p57, %p58
    %p61 = scmp.ne.s32.totalorder %s44, %s60
    %p62 = scmp.eq.s32.totalorder %s15, 0
    %p63 = por %p61, %p62
    %s64 = ssub.s32 %s18, %s27
    %s65 = ssub.s32 %s17, %s31
    %s66 = sor.u32 %s64, %s65
    %p67 = scmp.eq.s32.totalorder %s66, 0
    %s69 = sadd.s32 %s68, 1
    %s70 = scalar_select %p67, %s68, %s69
    %p73 = pneg %p67
    %p74 = scmp.eq.s32.totalorder %s9, 1
    %p75 = por %p73, %p74
    %p76 = scmp.ne.s32.totalorder %s68, %s71
    %p77 = scmp.eq.s32.totalorder %s9, 0
    %p78 = por %p76, %p77
    %p79 = scmp.ne.s32.totalorder %s68, %s71
    %p80 = scmp.eq.s32.totalorder %s14, 1
    %p81 = por %p79, %p80
    %p82 = scmp.ne.s32.totalorder %s71, %s72
    %p83 = scmp.eq.s32.totalorder %s14, 0
    %p84 = por %p82, %p83
    %p85 = scmp.ne.s32.totalorder %s71, %s72
    %p86 = scmp.eq.s32.totalorder %s15, 1
    %p87 = por %p85, %p86
    %p89 = scmp.ne.s32.totalorder %s72, %s88
    %p90 = scmp.eq.s32.totalorder %s15, 0
    %p91 = por %p89, %p90
    %s92 = ssub.s32 %s17, %s31
    %p93 = scmp.eq.s32.totalorder %s92, 0
    %s95 = sadd.s32 %s94, 1
    %s96 = scalar_select %p93, %s94, %s95
    %p99 = pneg %p93
    %p100 = scmp.eq.s32.totalorder %s9, 1
    %p101 = por %p99, %p100
    %p102 = scmp.ne.s32.totalorder %s94, %s97
    %p103 = scmp.eq.s32.totalorder %s9, 0
    %p104 = por %p102, %p103
    %p105 = scmp.ne.s32.totalorder %s94, %s97
    %p106 = scmp.eq.s32.totalorder %s14, 1
    %p107 = por %p105, %p106
    %p108 = scmp.ne.s32.totalorder %s97, %s98
    %p109 = scmp.eq.s32.totalorder %s14, 0
    %p110 = por %p108, %p109
    %p111 = scmp.ne.s32.totalorder %s97, %s98
    %p112 = scmp.eq.s32.totalorder %s15, 1
    %p113 = por %p111, %p112
    %p115 = scmp.ne.s32.totalorder %s98, %s114
    %p116 = scmp.eq.s32.totalorder %s15, 0
    %p117 = por %p115, %p116
    %s118 = ssub.s32 %s16, %s35
    %s119 = ssub.s32 %s17, %s31
    %s120 = sor.u32 %s118, %s119
    %p121 = scmp.eq.s32.totalorder %s120, 0
    %s123 = sadd.s32 %s122, 1
    %s124 = scalar_select %p121, %s122, %s123
    %p127 = pneg %p121
    %p128 = scmp.eq.s32.totalorder %s9, 1
    %p129 = por %p127, %p128
    %p130 = scmp.ne.s32.totalorder %s122, %s125
    %p131 = scmp.eq.s32.totalorder %s9, 0
    %p132 = por %p130, %p131
    %p133 = scmp.ne.s32.totalorder %s122, %s125
    %p134 = scmp.eq.s32.totalorder %s14, 1
    %p135 = por %p133, %p134
    %p136 = scmp.ne.s32.totalorder %s125, %s126
    %p137 = scmp.eq.s32.totalorder %s14, 0
    %p138 = por %p136, %p137
    %p139 = scmp.ne.s32.totalorder %s125, %s126
    %p140 = scmp.eq.s32.totalorder %s15, 1
    %p141 = por %p139, %p140
    %p143 = scmp.ne.s32.totalorder %s126, %s142
    %p144 = scmp.eq.s32.totalorder %s15, 0
    %p145 = por %p143, %p144
    %p146 = scmp.le.s32.totalorder 1, %s9
    %p147 = scmp.lt.s32.totalorder %s9, 3
    %p148 = pnand %p146, %p147
    %p149 = pneg %p148
    // Predicated region
    $region9: #{_lambda_.6} parent=5 // pred_check
      _
    $region10: #{_lambda_.6} parent=5 // pred_check_branch
      %151 = sbr.rel (%p148) target = $region12
    $region11: #{_lambda_.6} parent=5 // pred_region
      %s152 = ssub.s32 %s9, 1
      // Predicated region
      $region13: #{_lambda_.6} parent=11 // pred_check
        %p153 = pneg %p84
      $region14: #{_lambda_.6} parent=11 // pred_check_branch
        %155 = sbr.rel (%p153) target = $region16
      $region15: #{_lambda_.6} parent=11 // pred_region
        %s156 = smul.u32 16, %s21
        %p157 = scmp.lt.s32.totalorder %s156, 15
        %s158 = scalar_select %p157, %s156, 15
        %p159 = scmp.lt.s32.totalorder %s20, 0
        %s160 = scalar_select %p159, %s20, 0
        %s161 = sadd.s32 %s160, %s158
        %s162 = smul.addr %s161, 8
        %s163 = scalar_lea.vmem %s1, %s162
        %s164 = smul.u32 16, %s21
      $region16: #{_lambda_.6} parent=11 // pred_fallthru
        _
      // Predicated region
      $region17: #{_lambda_.6} parent=11 // pred_check
        %p165 = pneg %p110
      $region18: #{_lambda_.6} parent=11 // pred_check_branch
        %167 = sbr.rel (%p165) target = $region20
      $region19: #{_lambda_.6} parent=11 // pred_region
        %p168 = scmp.lt.s32.totalorder %s20, 0
        %s169 = scalar_select %p168, %s20, 0
        %s170 = scalar_lea.vmem %s2, %s169
      $region20: #{_lambda_.6} parent=11 // pred_fallthru
        _
    $region12: #{_lambda_.6} parent=5 // pred_fallthru
      _
    %p171 = scmp.lt.s32.totalorder %s9, 2
    // Predicated region
    $region21: #{_lambda_.6} parent=5 // pred_check
      %p172 = pneg %p171
    $region22: #{_lambda_.6} parent=5 // pred_check_branch
      %174 = sbr.rel (%p172) target = $region24
    $region23: #{_lambda_.6} parent=5 // pred_region
      // Predicated region
      $region25: #{_lambda_.6} parent=23 // pred_check
        %p175 = pneg %p50
      $region26: #{_lambda_.6} parent=23 // pred_check_branch
        %177 = sbr.rel (%p175) target = $region28
      $region27: #{_lambda_.6} parent=23 // pred_region
        %s178 = smul.u32 8, %s16
        %p179 = scmp.lt.s32.totalorder %s178, 15
        %s180 = scalar_select %p179, %s178, 15
        %p181 = scmp.lt.s32.totalorder %s18, 0
        %s182 = scalar_select %p181, %s18, 0
        %s183 = sadd.s32 %s182, %s180
        %s184 = smul.addr %s183, 8
        %s185 = scalar_lea.vmem %s0, %s184
        %s186 = smul.u32 8, %s16
      $region28: #{_lambda_.6} parent=23 // pred_fallthru
        _
    $region24: #{_lambda_.6} parent=5 // pred_fallthru
      _
    %p187 = scmp.le.s32.totalorder 1, %s9
    %p188 = scmp.lt.s32.totalorder %s9, 3
    %p189 = pnand %p187, %p188
    %p190 = pneg %p189
    // Predicated region
    $region29: #{_lambda_.6} parent=5 // pred_check
      _
    $region30: #{_lambda_.6} parent=5 // pred_check_branch
      %192 = sbr.rel (%p189) target = $region32
    $region31: #{_lambda_.6} parent=5 // pred_region
      %s193 = ssub.s32 %s9, 1
      %s194 = smul.u32 8, %s19
      %p195 = scmp.lt.s32.totalorder %s194, 15
      %s196 = scalar_select %p195, %s194, 15
      %p197 = scmp.lt.s32.totalorder %s21, 0
      %s198 = scalar_select %p197, %s21, 0
      %s199 = sadd.s32 %s198, %s196
      %s200 = smul.addr %s199, 8
      %s201 = scalar_lea.vmem %s0, %s200
      %p202 = pneg %p56
      %p203 = pneg %p53
      %s204 = smul.u32 16, %s21
      %p205 = scmp.lt.s32.totalorder %s204, 15
      %s206 = scalar_select %p205, %s204, 15
      %p207 = scmp.lt.s32.totalorder %s20, 0
      %s208 = scalar_select %p207, %s20, 0
      %s209 = sadd.s32 %s208, %s206
      %s210 = smul.addr %s209, 8
      %s211 = scalar_lea.vmem %s1, %s210
      %p212 = pneg %p84
      %p213 = pneg %p81
      %p214 = scmp.lt.s32.totalorder %s20, 0
      %s215 = scalar_select %p214, %s20, 0
      %s216 = scalar_lea.vmem %s2, %s215
      %p217 = pneg %p110
      %p218 = pneg %p107
      %p219 = pneg %p138
      %p220 = pneg %p135
      %s221 = smul.u32 8, %s19
      %p222 = scmp.lt.s32.totalorder %s221, 15
      %s223 = scalar_select %p222, %s221, 15
      %p224 = scmp.lt.s32.totalorder %s20, 0
      %s225 = scalar_select %p224, %s20, 0
      %s226 = sadd.s32 %s225, %s223
      %s227 = smul.addr %s226, 8
      %s228 = scalar_lea.vmem %s3, %s227
      %s229 = smul.u32 8, %s19
      %p230 = scmp.lt.s32.totalorder %s229, 15
      %s231 = scalar_select %p230, %s229, 15
      %p232 = scmp.lt.s32.totalorder %s21, 0
      %s233 = scalar_select %p232, %s21, 0
      %s234 = sadd.s32 %s233, %s231
      %s235 = smul.addr %s234, 8
      %s236 = scalar_lea.vmem %s0, %s235
      %s237 = smul.u32 8, %s19
      %s238 = smul.u32 16, %s21
      %p239 = scmp.lt.s32.totalorder %s238, 15
      %s240 = scalar_select %p239, %s238, 15
      %p241 = scmp.lt.s32.totalorder %s20, 0
      %s242 = scalar_select %p241, %s20, 0
      %s243 = sadd.s32 %s242, %s240
      %s244 = smul.addr %s243, 8
      %s245 = scalar_lea.vmem %s1, %s244
      %s246 = smul.u32 16, %s21
      %p247 = scmp.lt.s32.totalorder %s20, 0
      %s248 = scalar_select %p247, %s20, 0
      %s249 = scalar_lea.vmem %s2, %s248
      %s250 = smul.u32 8, %s19
      %p251 = scmp.lt.s32.totalorder %s250, 15
      %s252 = scalar_select %p251, %s250, 15
      %p253 = scmp.lt.s32.totalorder %s20, 0
      %s254 = scalar_select %p253, %s20, 0
      %s255 = sadd.s32 %s254, %s252
      %s256 = smul.addr %s255, 8
      %s257 = scalar_lea.vmem %s3, %s256
      %s258 = smul.u32 8, %s19
      %p259 = scmp.eq.s32.totalorder %s21, 0
      // Predicated region
      $region33: #{_lambda_.6} parent=31 // pred_check
        %p260 = pneg %p259
      $region34: #{_lambda_.6} parent=31 // pred_check_branch
        %262 = sbr.rel (%p260) target = $region36
      $region35: #{_lambda_.6} parent=31 // pred_region
        %263 = vst [vmem:[#allocation2] sm:$0xff] 0.0
        %264 = vst [vmem:[#allocation2 + $0x8] sm:$0xff] 0.0
        %265 = vst [vmem:[#allocation2 + $0x10] sm:$0xff] 0.0
        %266 = vst [vmem:[#allocation2 + $0x18] sm:$0xff] 0.0
        %267 = vst [vmem:[#allocation2 + $0x20] sm:$0xff] 0.0
        %268 = vst [vmem:[#allocation2 + $0x28] sm:$0xff] 0.0
        %269 = vst [vmem:[#allocation2 + $0x30] sm:$0xff] 0.0
        %270 = vst [vmem:[#allocation2 + $0x38] sm:$0xff] 0.0
      $region36: #{_lambda_.6} parent=31 // pred_fallthru
        _
      %v271 = vld [vmem:[#allocation2] sm:$0xff]
      %v272 = vld [vmem:[#allocation2 + $0x8] sm:$0xff]
      %v273 = vld [vmem:[#allocation2 + $0x10] sm:$0xff]
      %v274 = vld [vmem:[#allocation2 + $0x18] sm:$0xff]
      %v275 = vld [vmem:[#allocation2 + $0x20] sm:$0xff]
      %v276 = vld [vmem:[#allocation2 + $0x28] sm:$0xff]
      %v277 = vld [vmem:[#allocation2 + $0x30] sm:$0xff]
      %v278 = vld [vmem:[#allocation2 + $0x38] sm:$0xff]
      %v279 = vld [vmem:[%s236] sm:$0xff]
      %v280 = vld [vmem:[%s236 + $0x8] sm:$0xff]
      %v281 = vld [vmem:[%s236 + $0x10] sm:$0xff]
      %v282 = vld [vmem:[%s236 + $0x18] sm:$0xff]
      %v283 = vld [vmem:[%s236 + $0x20] sm:$0xff]
      %v284 = vld [vmem:[%s236 + $0x28] sm:$0xff]
      %v285 = vld [vmem:[%s236 + $0x30] sm:$0xff]
      %v286 = vld [vmem:[%s236 + $0x38] sm:$0xff]
      %v287 = vld [vmem:[%s245] sm:$0xff]
      %v288 = vld [vmem:[%s245 + $0x8] sm:$0xff]
      %v289 = vld [vmem:[%s245 + $0x10] sm:$0xff]
      %v290 = vld [vmem:[%s245 + $0x18] sm:$0xff]
      %v291 = vld [vmem:[%s245 + $0x20] sm:$0xff]
      %v292 = vld [vmem:[%s245 + $0x28] sm:$0xff]
      %v293 = vld [vmem:[%s245 + $0x30] sm:$0xff]
      %v294 = vld [vmem:[%s245 + $0x38] sm:$0xff]
      %v295 = vld [vmem:[%s245 + $0x40] sm:$0xff]
      %v296 = vld [vmem:[%s245 + $0x48] sm:$0xff]
      %v297 = vld [vmem:[%s245 + $0x50] sm:$0xff]
      %v298 = vld [vmem:[%s245 + $0x58] sm:$0xff]
      %v299 = vld [vmem:[%s245 + $0x60] sm:$0xff]
      %v300 = vld [vmem:[%s245 + $0x68] sm:$0xff]
      %v301 = vld [vmem:[%s245 + $0x70] sm:$0xff]
      %v302 = vld [vmem:[%s245 + $0x78] sm:$0xff]
      %303 = vmatprep.subr.mxu0 0.0
      %304 = vmatpush1.msra.mxu0 %v287
      %305 = vmatprep.subr.mxu0 0.0
      %306 = vmatpush1.msra.mxu0 %v288
      %307 = vmatprep.subr.mxu0 0.0
      %308 = vmatpush1.msra.mxu0 %v289
      %309 = vmatprep.subr.mxu0 0.0
      %310 = vmatpush1.msra.mxu0 %v290
      %311 = vmatprep.subr.mxu0 0.0
      %312 = vmatpush1.msra.mxu0 %v291
      %313 = vmatprep.subr.mxu0 0.0
      %314 = vmatpush1.msra.mxu0 %v292
      %315 = vmatprep.subr.mxu0 0.0
      %316 = vmatpush1.msra.mxu0 %v293
      %317 = vmatprep.subr.mxu0 0.0
      %318 = vmatpush1.msra.mxu0 %v294
      %319 = vmatprep.subr.mxu0 0.0
      %320 = vmatpush1.msra.mxu0 %v295
      %321 = vmatprep.subr.mxu0 0.0
      %322 = vmatpush1.msra.mxu0 %v296
      %323 = vmatprep.subr.mxu0 0.0
      %324 = vmatpush1.msra.mxu0 %v297
      %325 = vmatprep.subr.mxu0 0.0
      %326 = vmatpush1.msra.mxu0 %v298
      %327 = vmatprep.subr.mxu0 0.0
      %328 = vmatpush1.msra.mxu0 %v299
      %329 = vmatprep.subr.mxu0 0.0
      %330 = vmatpush1.msra.mxu0 %v300
      %331 = vmatprep.subr.mxu0 0.0
      %332 = vmatpush1.msra.mxu0 %v301
      %333 = vmatprep.subr.mxu0 0.0
      %334 = vmatpush1.msra.mxu0 %v302
      %335 = vmatprep.subr.mxu0 0.0
      %336 = vmatpush1.msra.mxu0 0.0
      %337 = vmatprep.subr.mxu0 0.0
      %338 = vmatpush1.msra.mxu0 0.0
      %339 = vmatprep.subr.mxu0 0.0
      %340 = vmatpush1.msra.mxu0 0.0
      %341 = vmatprep.subr.mxu0 0.0
      %342 = vmatpush1.msra.mxu0 0.0
      %343 = vmatprep.subr.mxu0 0.0
      %344 = vmatpush1.msra.mxu0 0.0
      %345 = vmatprep.subr.mxu0 0.0
      %346 = vmatpush1.msra.mxu0 0.0
      %347 = vmatprep.subr.mxu0 0.0
      %348 = vmatpush1.msra.mxu0 0.0
      %349 = vmatprep.subr.mxu0 0.0
      %350 = vmatpush1.msra.mxu0 0.0
      %351 = vmatprep.subr.mxu0 0.0
      %352 = vmatpush1.msra.mxu0 0.0
      %353 = vmatprep.subr.mxu0 0.0
      %354 = vmatpush1.msra.mxu0 0.0
      %355 = vmatprep.subr.mxu0 0.0
      %356 = vmatpush1.msra.mxu0 0.0
      %357 = vmatprep.subr.mxu0 0.0
      %358 = vmatpush1.msra.mxu0 0.0
      %359 = vmatprep.subr.mxu0 0.0
      %360 = vmatpush1.msra.mxu0 0.0
      %361 = vmatprep.subr.mxu0 0.0
      %362 = vmatpush1.msra.mxu0 0.0
      %363 = vmatprep.subr.mxu0 0.0
      %364 = vmatpush1.msra.mxu0 0.0
      %365 = vmatprep.subr.mxu0 0.0
      %366 = vmatpush1.msra.mxu0 0.0
      %367 = vmatprep.mubr.f32.mxu0 0.0
      %368 = vmatmul.mubr.f32.gmra.mrb[0].mxu0 %v279
      %v369 = vpop.f32.mrb[0].mxu0
      %v370 = vadd.f32 0.0, %v369
      %v371 = vpop.f32.mrb[0].mxu0
      %372 = vmatprep.mubr.f32.mxu0 0.0
      %373 = vmatmul.mubr.f32.gmra.mrb[0].mxu0 %v280
      %v374 = vpop.f32.mrb[0].mxu0
      %v375 = vadd.f32 0.0, %v374
      %v376 = vpop.f32.mrb[0].mxu0
      %377 = vmatprep.mubr.f32.mxu0 0.0
      %378 = vmatmul.mubr.f32.gmra.mrb[0].mxu0 %v281
      %v379 = vpop.f32.mrb[0].mxu0
      %v380 = vadd.f32 0.0, %v379
      %v381 = vpop.f32.mrb[0].mxu0
      %382 = vmatprep.mubr.f32.mxu0 0.0
      %383 = vmatmul.mubr.f32.gmra.mrb[0].mxu0 %v282
      %v384 = vpop.f32.mrb[0].mxu0
      %v385 = vadd.f32 0.0, %v384
      %v386 = vpop.f32.mrb[0].mxu0
      %387 = vmatprep.mubr.f32.mxu0 0.0
      %388 = vmatmul.mubr.f32.gmra.mrb[0].mxu0 %v283
      %v389 = vpop.f32.mrb[0].mxu0
      %v390 = vadd.f32 0.0, %v389
      %v391 = vpop.f32.mrb[0].mxu0
      %392 = vmatprep.mubr.f32.mxu0 0.0
      %393 = vmatmul.mubr.f32.gmra.mrb[0].mxu0 %v284
      %v394 = vpop.f32.mrb[0].mxu0
      %v395 = vadd.f32 0.0, %v394
      %v396 = vpop.f32.mrb[0].mxu0
      %397 = vmatprep.mubr.f32.mxu0 0.0
      %398 = vmatmul.mubr.f32.gmra.mrb[0].mxu0 %v285
      %v399 = vpop.f32.mrb[0].mxu0
      %v400 = vadd.f32 0.0, %v399
      %v401 = vpop.f32.mrb[0].mxu0
      %402 = vmatprep.mubr.f32.mxu0 0.0
      %403 = vmatmul.mubr.f32.gmra.mrb[0].mxu0 %v286
      %v404 = vpop.f32.mrb[0].mxu0
      %v405 = vadd.f32 0.0, %v404
      %v406 = vpop.f32.mrb[0].mxu0
      %407 = vdwg.mxu0
      %v408 = vadd.f32 %v271, %v370
      %v409 = vadd.f32 %v272, %v375
      %v410 = vadd.f32 %v273, %v380
      %v411 = vadd.f32 %v274, %v385
      %v412 = vadd.f32 %v275, %v390
      %v413 = vadd.f32 %v276, %v395
      %v414 = vadd.f32 %v277, %v400
      %v415 = vadd.f32 %v278, %v405
      %416 = vst [vmem:[#allocation2] sm:$0xff] %v408
      %417 = vst [vmem:[#allocation2 + $0x8] sm:$0xff] %v409
      %418 = vst [vmem:[#allocation2 + $0x10] sm:$0xff] %v410
      %419 = vst [vmem:[#allocation2 + $0x18] sm:$0xff] %v411
      %420 = vst [vmem:[#allocation2 + $0x20] sm:$0xff] %v412
      %421 = vst [vmem:[#allocation2 + $0x28] sm:$0xff] %v413
      %422 = vst [vmem:[#allocation2 + $0x30] sm:$0xff] %v414
      %423 = vst [vmem:[#allocation2 + $0x38] sm:$0xff] %v415
      // Predicated region
      $region37: #{_lambda_.6} parent=31 // pred_check
        %p424 = pneg %p259
      $region38: #{_lambda_.6} parent=31 // pred_check_branch
        %426 = sbr.rel (%p424) target = $region40
      $region39: #{_lambda_.6} parent=31 // pred_region
        %v427 = vld [vmem:[#allocation2] sm:$0xff]
        %v428 = vld [vmem:[#allocation2 + $0x8] sm:$0xff]
        %v429 = vld [vmem:[#allocation2 + $0x10] sm:$0xff]
        %v430 = vld [vmem:[#allocation2 + $0x18] sm:$0xff]
        %v431 = vld [vmem:[#allocation2 + $0x20] sm:$0xff]
        %v432 = vld [vmem:[#allocation2 + $0x28] sm:$0xff]
        %v433 = vld [vmem:[#allocation2 + $0x30] sm:$0xff]
        %v434 = vld [vmem:[#allocation2 + $0x38] sm:$0xff]
        %v435 = vld [vmem:[%s249] sm:$0x1]
        %v437 = vlaneseq
        %v438 = vshrl.u32 %v437, 7
        %v439 = vsub.s32 0, %v438
        %v440 = vrot.slane %v435, %v439
        %v442 = vadd.f32 %v427, %v440
        %v443 = vadd.f32 %v428, %v440
        %v444 = vadd.f32 %v429, %v440
        %v445 = vadd.f32 %v430, %v440
        %v446 = vadd.f32 %v431, %v440
        %v447 = vadd.f32 %v432, %v440
        %v448 = vadd.f32 %v433, %v440
        %v449 = vadd.f32 %v434, %v440
        %v450 = vmax.f32 %v442, 0.0
        %v451 = vmax.f32 %v443, 0.0
        %v452 = vmax.f32 %v444, 0.0
        %v453 = vmax.f32 %v445, 0.0
        %v454 = vmax.f32 %v446, 0.0
        %v455 = vmax.f32 %v447, 0.0
        %v456 = vmax.f32 %v448, 0.0
        %v457 = vmax.f32 %v449, 0.0
        %458 = vst [vmem:[%s257] sm:$0xff] %v450
        %459 = vst [vmem:[%s257 + $0x8] sm:$0xff] %v451
        %460 = vst [vmem:[%s257 + $0x10] sm:$0xff] %v452
        %461 = vst [vmem:[%s257 + $0x18] sm:$0xff] %v453
        %462 = vst [vmem:[%s257 + $0x20] sm:$0xff] %v454
        %463 = vst [vmem:[%s257 + $0x28] sm:$0xff] %v455
        %464 = vst [vmem:[%s257 + $0x30] sm:$0xff] %v456
        %465 = vst [vmem:[%s257 + $0x38] sm:$0xff] %v457
      $region40: #{_lambda_.6} parent=31 // pred_fallthru
        _
      %s466 = smul.u32 8, %s19
      %p467 = scmp.lt.s32.totalorder %s466, 15
      %s468 = scalar_select %p467, %s466, 15
      %p469 = scmp.lt.s32.totalorder %s20, 0
      %s470 = scalar_select %p469, %s20, 0
      %s471 = sadd.s32 %s470, %s468
      %s472 = smul.addr %s471, 8
      %s473 = scalar_lea.vmem %s3, %s472
      // Predicated region
      $region41: #{_lambda_.6} parent=31 // pred_check
        %p474 = pneg %p135
      $region42: #{_lambda_.6} parent=31 // pred_check_branch
        %476 = sbr.rel (%p474) target = $region44
      $region43: #{_lambda_.6} parent=31 // pred_region
        %s477 = smul.u32 8, %s19
      $region44: #{_lambda_.6} parent=31 // pred_fallthru
        _
    $region32: #{_lambda_.6} parent=5 // pred_fallthru
      _
    %p478 = scmp.le.s32.totalorder 2, %s9
    // Predicated region
    $region45: #{_lambda_.6} parent=5 // pred_check
      %p479 = pneg %p478
    $region46: #{_lambda_.6} parent=5 // pred_check_branch
      %481 = sbr.rel (%p479) target = $region48
    $region47: #{_lambda_.6} parent=5 // pred_region
      %s482 = ssub.s32 %s9, 2
      // Predicated region
      $region49: #{_lambda_.6} parent=47 // pred_check
        %p483 = pneg %p141
      $region50: #{_lambda_.6} parent=47 // pred_check_branch
        %485 = sbr.rel (%p483) target = $region52
      $region51: #{_lambda_.6} parent=47 // pred_region
        %s486 = smul.u32 8, %s22
        %p487 = scmp.lt.s32.totalorder %s486, 15
        %s488 = scalar_select %p487, %s486, 15
        %p489 = scmp.lt.s32.totalorder %s23, 0
        %s490 = scalar_select %p489, %s23, 0
        %s491 = sadd.s32 %s490, %s488
        %s492 = smul.addr %s491, 8
        %s493 = scalar_lea.vmem %s3, %s492
      $region52: #{_lambda_.6} parent=47 // pred_fallthru
        _
    $region48: #{_lambda_.6} parent=5 // pred_fallthru
      _
  $region6: #{_lambda_.6} parent=0 // loop_footer
    %s13 = sadd.s32 1, %s9
  $region7: #{_lambda_.6} parent=0 // loop_footer_branch
    %8 = sbr.rel target = $region3
  $region8: #{_lambda_.6} parent=0 // loop_exit
    _

// kernel: _lambda_.7
$region0: #{_lambda_.7}
  #allocation0 [shape = 'u32[]', space=smem, size = 0x4, offset = 0x4, fixed_abs, tag = 'smem constant byte address 0x4 - core index']
  #allocation1 [shape = 'u32[144,128]{1,0:T(1,128)}', space=vmem, size = 0x12000, scoped, tag = 'internal scratch']
  #allocation2 [shape = 'f32[64,128]{1,0:T(8,128)}', space=vmem, size = 0x8000, scoped, tag = 'scratch operand']
  %s0 = inlined_call_operand.vmem [shape: f32[128,128], index: 0, kind: input, shape index: {}]
  %s1 = inlined_call_operand.vmem [shape: f32[128,128], index: 1, kind: input, shape index: {}]
  %s2 = inlined_call_operand.vmem [shape: f32[128,128], index: 2, kind: input, shape index: {}]
  %s3 = inlined_call_operand.vmem [shape: f32[128,128], index: 3, kind: output, shape index: {}]
  %s4 = sld [smem:[#allocation0]]
  $region53: #{_lambda_.7} parent=0
    _
  %s6 = ssub.s32 1, %s4
  %s7 = scalar_select 0, %s6, %s4
  loop: start=0, step=1, limit=4
  $region2: #{_lambda_.7} parent=0 // loop_pre_header
    _
  $region3: #{_lambda_.7} parent=0 // loop_header
    %s9 = sphi 0, %s13
    %p10 = scmp.ge.s32.totalorder %s9, 4
    %s16 = sphi 0, %s35
    %s17 = sphi 0, %s31
    %s18 = sphi 0, %s27
    %s19 = sphi 0, %s16
    %s20 = sphi 0, %s17
    %s21 = sphi 0, %s18
    %s22 = sphi 0, %s19
    %s23 = sphi 0, %s20
    %s24 = sphi 0, %s21
    %s40 = sphi 0, %s42
    %s43 = sphi 0, %s40
    %s44 = sphi 0, %s43
    %s60 = sphi 0, %s44
    %s68 = sphi 0, %s70
    %s71 = sphi 0, %s68
    %s72 = sphi 0, %s71
    %s88 = sphi 0, %s72
    %s96 = sphi 0, %s98
    %s99 = sphi 0, %s96
    %s100 = sphi 0, %s99
    %s116 = sphi 0, %s100
    %s124 = sphi 0, %s126
    %s127 = sphi 0, %s124
    %s128 = sphi 0, %s127
    %s144 = sphi 0, %s128
  $region4: #{_lambda_.7} parent=0 // loop_header_branch
    %12 = sbr.rel (%p10) target = $region8
  $region5: #{_lambda_.7} parent=0 // loop_body
    %s14 = ssub.s32 %s9, 1
    %s15 = ssub.s32 %s9, 2
    %s25 = sadd.s32 1, %s18
    %p26 = scmp.ge.s32.totalorder %s25, 1
    %s27 = scalar_select %p26, 0, %s25
    %s28 = sadd.s32 1, %s17
    %s29 = scalar_select %p26, %s28, %s17
    %p30 = scmp.ge.s32.totalorder %s29, 1
    %s31 = scalar_select %p30, 0, %s29
    %s32 = sadd.s32 1, %s16
    %s33 = scalar_select %p30, %s32, %s16
    %p34 = scmp.ge.s32.totalorder %s33, 2
    %s35 = scalar_select %p34, 0, %s33
    %s36 = ssub.s32 %s16, %s35
    %s37 = ssub.s32 %s18, %s27
    %s38 = sor.u32 %s36, %s37
    %p39 = scmp.eq.s32.totalorder %s38, 0
    %s41 = sadd.s32 %s40, 1
    %s42 = scalar_select %p39, %s40, %s41
    %p45 = pneg %p39
    %p46 = scmp.eq.s32.totalorder %s9, 1
    %p47 = por %p45, %p46
    %p48 = scmp.ne.s32.totalorder %s40, %s43
    %p49 = scmp.eq.s32.totalorder %s9, 0
    %p50 = por %p48, %p49
    %p51 = scmp.ne.s32.totalorder %s40, %s43
    %p52 = scmp.eq.s32.totalorder %s14, 1
    %p53 = por %p51, %p52
    %p54 = scmp.ne.s32.totalorder %s43, %s44
    %p55 = scmp.eq.s32.totalorder %s14, 0
    %p56 = por %p54, %p55
    %p57 = scmp.ne.s32.totalorder %s43, %s44
    %p58 = scmp.eq.s32.totalorder %s15, 1
    %p59 = por %p57, %p58
    %p61 = scmp.ne.s32.totalorder %s44, %s60
    %p62 = scmp.eq.s32.totalorder %s15, 0
    %p63 = por %p61, %p62
    %s64 = ssub.s32 %s18, %s27
    %s65 = ssub.s32 %s17, %s31
    %s66 = sor.u32 %s64, %s65
    %p67 = scmp.eq.s32.totalorder %s66, 0
    %s69 = sadd.s32 %s68, 1
    %s70 = scalar_select %p67, %s68, %s69
    %p73 = pneg %p67
    %p74 = scmp.eq.s32.totalorder %s9, 1
    %p75 = por %p73, %p74
    %p76 = scmp.ne.s32.totalorder %s68, %s71
    %p77 = scmp.eq.s32.totalorder %s9, 0
    %p78 = por %p76, %p77
    %p79 = scmp.ne.s32.totalorder %s68, %s71
    %p80 = scmp.eq.s32.totalorder %s14, 1
    %p81 = por %p79, %p80
    %p82 = scmp.ne.s32.totalorder %s71, %s72
    %p83 = scmp.eq.s32.totalorder %s14, 0
    %p84 = por %p82, %p83
    %p85 = scmp.ne.s32.totalorder %s71, %s72
    %p86 = scmp.eq.s32.totalorder %s15, 1
    %p87 = por %p85, %p86
    %p89 = scmp.ne.s32.totalorder %s72, %s88
    %p90 = scmp.eq.s32.totalorder %s15, 0
    %p91 = por %p89, %p90
    %s92 = ssub.s32 %s16, %s35
    %s93 = ssub.s32 %s17, %s31
    %s94 = sor.u32 %s92, %s93
    %p95 = scmp.eq.s32.totalorder %s94, 0
    %s97 = sadd.s32 %s96, 1
    %s98 = scalar_select %p95, %s96, %s97
    %p101 = pneg %p95
    %p102 = scmp.eq.s32.totalorder %s9, 1
    %p103 = por %p101, %p102
    %p104 = scmp.ne.s32.totalorder %s96, %s99
    %p105 = scmp.eq.s32.totalorder %s9, 0
    %p106 = por %p104, %p105
    %p107 = scmp.ne.s32.totalorder %s96, %s99
    %p108 = scmp.eq.s32.totalorder %s14, 1
    %p109 = por %p107, %p108
    %p110 = scmp.ne.s32.totalorder %s99, %s100
    %p111 = scmp.eq.s32.totalorder %s14, 0
    %p112 = por %p110, %p111
    %p113 = scmp.ne.s32.totalorder %s99, %s100
    %p114 = scmp.eq.s32.totalorder %s15, 1
    %p115 = por %p113, %p114
    %p117 = scmp.ne.s32.totalorder %s100, %s116
    %p118 = scmp.eq.s32.totalorder %s15, 0
    %p119 = por %p117, %p118
    %s120 = ssub.s32 %s16, %s35
    %s121 = ssub.s32 %s17, %s31
    %s122 = sor.u32 %s120, %s121
    %p123 = scmp.eq.s32.totalorder %s122, 0
    %s125 = sadd.s32 %s124, 1
    %s126 = scalar_select %p123, %s124, %s125
    %p129 = pneg %p123
    %p130 = scmp.eq.s32.totalorder %s9, 1
    %p131 = por %p129, %p130
    %p132 = scmp.ne.s32.totalorder %s124, %s127
    %p133 = scmp.eq.s32.totalorder %s9, 0
    %p134 = por %p132, %p133
    %p135 = scmp.ne.s32.totalorder %s124, %s127
    %p136 = scmp.eq.s32.totalorder %s14, 1
    %p137 = por %p135, %p136
    %p138 = scmp.ne.s32.totalorder %s127, %s128
    %p139 = scmp.eq.s32.totalorder %s14, 0
    %p140 = por %p138, %p139
    %p141 = scmp.ne.s32.totalorder %s127, %s128
    %p142 = scmp.eq.s32.totalorder %s15, 1
    %p143 = por %p141, %p142
    %p145 = scmp.ne.s32.totalorder %s128, %s144
    %p146 = scmp.eq.s32.totalorder %s15, 0
    %p147 = por %p145, %p146
    %p148 = scmp.le.s32.totalorder 1, %s9
    %p149 = scmp.lt.s32.totalorder %s9, 3
    %p150 = pnand %p148, %p149
    %p151 = pneg %p150
    // Predicated region
    $region9: #{_lambda_.7} parent=5 // pred_check
      _
    $region10: #{_lambda_.7} parent=5 // pred_check_branch
      %153 = sbr.rel (%p150) target = $region12
    $region11: #{_lambda_.7} parent=5 // pred_region
      %s154 = ssub.s32 %s9, 1
      // Predicated region
      $region13: #{_lambda_.7} parent=11 // pred_check
        %p155 = pneg %p84
      $region14: #{_lambda_.7} parent=11 // pred_check_branch
        %157 = sbr.rel (%p155) target = $region16
      $region15: #{_lambda_.7} parent=11 // pred_region
        %s158 = smul.u32 16, %s21
        %p159 = scmp.lt.s32.totalorder %s158, 15
        %s160 = scalar_select %p159, %s158, 15
        %p161 = scmp.lt.s32.totalorder %s20, 0
        %s162 = scalar_select %p161, %s20, 0
        %s163 = sadd.s32 %s162, %s160
        %s164 = smul.addr %s163, 8
        %s165 = scalar_lea.vmem %s1, %s164
        %s166 = smul.u32 16, %s21
      $region16: #{_lambda_.7} parent=11 // pred_fallthru
        _
    $region12: #{_lambda_.7} parent=5 // pred_fallthru
      _
    %p167 = scmp.lt.s32.totalorder %s9, 2
    // Predicated region
    $region17: #{_lambda_.7} parent=5 // pred_check
      %p168 = pneg %p167
    $region18: #{_lambda_.7} parent=5 // pred_check_branch
      %170 = sbr.rel (%p168) target = $region20
    $region19: #{_lambda_.7} parent=5 // pred_region
      // Predicated region
      $region21: #{_lambda_.7} parent=19 // pred_check
        %p171 = pneg %p50
      $region22: #{_lambda_.7} parent=19 // pred_check_branch
        %173 = sbr.rel (%p171) target = $region24
      $region23: #{_lambda_.7} parent=19 // pred_region
        %s174 = smul.u32 8, %s16
        %p175 = scmp.lt.s32.totalorder %s174, 15
        %s176 = scalar_select %p175, %s174, 15
        %p177 = scmp.lt.s32.totalorder %s18, 0
        %s178 = scalar_select %p177, %s18, 0
        %s179 = sadd.s32 %s178, %s176
        %s180 = smul.addr %s179, 8
        %s181 = scalar_lea.vmem %s0, %s180
        %s182 = smul.u32 8, %s16
      $region24: #{_lambda_.7} parent=19 // pred_fallthru
        _
      // Predicated region
      $region25: #{_lambda_.7} parent=19 // pred_check
        %p183 = pneg %p106
      $region26: #{_lambda_.7} parent=19 // pred_check_branch
        %185 = sbr.rel (%p183) target = $region28
      $region27: #{_lambda_.7} parent=19 // pred_region
        %s186 = smul.u32 8, %s16
        %p187 = scmp.lt.s32.totalorder %s186, 15
        %s188 = scalar_select %p187, %s186, 15
        %p189 = scmp.lt.s32.totalorder %s17, 0
        %s190 = scalar_select %p189, %s17, 0
        %s191 = sadd.s32 %s190, %s188
        %s192 = smul.addr %s191, 8
        %s193 = scalar_lea.vmem %s2, %s192
        %s194 = smul.u32 8, %s16
      $region28: #{_lambda_.7} parent=19 // pred_fallthru
        _
    $region20: #{_lambda_.7} parent=5 // pred_fallthru
      _
    %p195 = scmp.le.s32.totalorder 1, %s9
    %p196 = scmp.lt.s32.totalorder %s9, 3
    %p197 = pnand %p195, %p196
    %p198 = pneg %p197
    // Predicated region
    $region29: #{_lambda_.7} parent=5 // pred_check
      _
    $region30: #{_lambda_.7} parent=5 // pred_check_branch
      %200 = sbr.rel (%p197) target = $region32
    $region31: #{_lambda_.7} parent=5 // pred_region
      %s201 = ssub.s32 %s9, 1
      %s202 = smul.u32 8, %s19
      %p203 = scmp.lt.s32.totalorder %s202, 15
      %s204 = scalar_select %p203, %s202, 15
      %p205 = scmp.lt.s32.totalorder %s21, 0
      %s206 = scalar_select %p205, %s21, 0
      %s207 = sadd.s32 %s206, %s204
      %s208 = smul.addr %s207, 8
      %s209 = scalar_lea.vmem %s0, %s208
      %p210 = pneg %p56
      %p211 = pneg %p53
      %s212 = smul.u32 16, %s21
      %p213 = scmp.lt.s32.totalorder %s212, 15
      %s214 = scalar_select %p213, %s212, 15
      %p215 = scmp.lt.s32.totalorder %s20, 0
      %s216 = scalar_select %p215, %s20, 0
      %s217 = sadd.s32 %s216, %s214
      %s218 = smul.addr %s217, 8
      %s219 = scalar_lea.vmem %s1, %s218
      %p220 = pneg %p84
      %p221 = pneg %p81
      %s222 = smul.u32 8, %s19
      %p223 = scmp.lt.s32.totalorder %s222, 15
      %s224 = scalar_select %p223, %s222, 15
      %p225 = scmp.lt.s32.totalorder %s20, 0
      %s226 = scalar_select %p225, %s20, 0
      %s227 = sadd.s32 %s226, %s224
      %s228 = smul.addr %s227, 8
      %s229 = scalar_lea.vmem %s2, %s228
      %p230 = pneg %p112
      %p231 = pneg %p109
      %p232 = pneg %p140
      %p233 = pneg %p137
      %s234 = smul.u32 8, %s19
      %p235 = scmp.lt.s32.totalorder %s234, 15
      %s236 = scalar_select %p235, %s234, 15
      %p237 = scmp.lt.s32.totalorder %s20, 0
      %s238 = scalar_select %p237, %s20, 0
      %s239 = sadd.s32 %s238, %s236
      %s240 = smul.addr %s239, 8
      %s241 = scalar_lea.vmem %s3, %s240
      %s242 = smul.u32 8, %s19
      %p243 = scmp.lt.s32.totalorder %s242, 15
      %s244 = scalar_select %p243, %s242, 15
      %p245 = scmp.lt.s32.totalorder %s21, 0
      %s246 = scalar_select %p245, %s21, 0
      %s247 = sadd.s32 %s246, %s244
      %s248 = smul.addr %s247, 8
      %s249 = scalar_lea.vmem %s0, %s248
      %s250 = smul.u32 8, %s19
      %s251 = smul.u32 16, %s21
      %p252 = scmp.lt.s32.totalorder %s251, 15
      %s253 = scalar_select %p252, %s251, 15
      %p254 = scmp.lt.s32.totalorder %s20, 0
      %s255 = scalar_select %p254, %s20, 0
      %s256 = sadd.s32 %s255, %s253
      %s257 = smul.addr %s256, 8
      %s258 = scalar_lea.vmem %s1, %s257
      %s259 = smul.u32 16, %s21
      %s260 = smul.u32 8, %s19
      %p261 = scmp.lt.s32.totalorder %s260, 15
      %s262 = scalar_select %p261, %s260, 15
      %p263 = scmp.lt.s32.totalorder %s20, 0
      %s264 = scalar_select %p263, %s20, 0
      %s265 = sadd.s32 %s264, %s262
      %s266 = smul.addr %s265, 8
      %s267 = scalar_lea.vmem %s2, %s266
      %s268 = smul.u32 8, %s19
      %s269 = smul.u32 8, %s19
      %p270 = scmp.lt.s32.totalorder %s269, 15
      %s271 = scalar_select %p270, %s269, 15
      %p272 = scmp.lt.s32.totalorder %s20, 0
      %s273 = scalar_select %p272, %s20, 0
      %s274 = sadd.s32 %s273, %s271
      %s275 = smul.addr %s274, 8
      %s276 = scalar_lea.vmem %s3, %s275
      %s277 = smul.u32 8, %s19
      %p278 = scmp.eq.s32.totalorder %s21, 0
      // Predicated region
      $region33: #{_lambda_.7} parent=31 // pred_check
        %p279 = pneg %p278
      $region34: #{_lambda_.7} parent=31 // pred_check_branch
        %281 = sbr.rel (%p279) target = $region36
      $region35: #{_lambda_.7} parent=31 // pred_region
        %282 = vst [vmem:[#allocation2] sm:$0xff] 0.0
        %283 = vst [vmem:[#allocation2 + $0x8] sm:$0xff] 0.0
        %284 = vst [vmem:[#allocation2 + $0x10] sm:$0xff] 0.0
        %285 = vst [vmem:[#allocation2 + $0x18] sm:$0xff] 0.0
        %286 = vst [vmem:[#allocation2 + $0x20] sm:$0xff] 0.0
        %287 = vst [vmem:[#allocation2 + $0x28] sm:$0xff] 0.0
        %288 = vst [vmem:[#allocation2 + $0x30] sm:$0xff] 0.0
        %289 = vst [vmem:[#allocation2 + $0x38] sm:$0xff] 0.0
      $region36: #{_lambda_.7} parent=31 // pred_fallthru
        _
      %v290 = vld [vmem:[#allocation2] sm:$0xff]
      %v291 = vld [vmem:[#allocation2 + $0x8] sm:$0xff]
      %v292 = vld [vmem:[#allocation2 + $0x10] sm:$0xff]
      %v293 = vld [vmem:[#allocation2 + $0x18] sm:$0xff]
      %v294 = vld [vmem:[#allocation2 + $0x20] sm:$0xff]
      %v295 = vld [vmem:[#allocation2 + $0x28] sm:$0xff]
      %v296 = vld [vmem:[#allocation2 + $0x30] sm:$0xff]
      %v297 = vld [vmem:[#allocation2 + $0x38] sm:$0xff]
      %v298 = vld [vmem:[%s249] sm:$0xff]
      %v299 = vld [vmem:[%s249 + $0x8] sm:$0xff]
      %v300 = vld [vmem:[%s249 + $0x10] sm:$0xff]
      %v301 = vld [vmem:[%s249 + $0x18] sm:$0xff]
      %v302 = vld [vmem:[%s249 + $0x20] sm:$0xff]
      %v303 = vld [vmem:[%s249 + $0x28] sm:$0xff]
      %v304 = vld [vmem:[%s249 + $0x30] sm:$0xff]
      %v305 = vld [vmem:[%s249 + $0x38] sm:$0xff]
      %v306 = vld [vmem:[%s258] sm:$0xff]
      %v307 = vld [vmem:[%s258 + $0x8] sm:$0xff]
      %v308 = vld [vmem:[%s258 + $0x10] sm:$0xff]
      %v309 = vld [vmem:[%s258 + $0x18] sm:$0xff]
      %v310 = vld [vmem:[%s258 + $0x20] sm:$0xff]
      %v311 = vld [vmem:[%s258 + $0x28] sm:$0xff]
      %v312 = vld [vmem:[%s258 + $0x30] sm:$0xff]
      %v313 = vld [vmem:[%s258 + $0x38] sm:$0xff]
      %v314 = vld [vmem:[%s258 + $0x40] sm:$0xff]
      %v315 = vld [vmem:[%s258 + $0x48] sm:$0xff]
      %v316 = vld [vmem:[%s258 + $0x50] sm:$0xff]
      %v317 = vld [vmem:[%s258 + $0x58] sm:$0xff]
      %v318 = vld [vmem:[%s258 + $0x60] sm:$0xff]
      %v319 = vld [vmem:[%s258 + $0x68] sm:$0xff]
      %v320 = vld [vmem:[%s258 + $0x70] sm:$0xff]
      %v321 = vld [vmem:[%s258 + $0x78] sm:$0xff]
      %322 = vmatprep.subr.mxu0 0.0
      %323 = vmatpush1.msra.mxu0 %v306
      %324 = vmatprep.subr.mxu0 0.0
      %325 = vmatpush1.msra.mxu0 %v307
      %326 = vmatprep.subr.mxu0 0.0
      %327 = vmatpush1.msra.mxu0 %v308
      %328 = vmatprep.subr.mxu0 0.0
      %329 = vmatpush1.msra.mxu0 %v309
      %330 = vmatprep.subr.mxu0 0.0
      %331 = vmatpush1.msra.mxu0 %v310
      %332 = vmatprep.subr.mxu0 0.0
      %333 = vmatpush1.msra.mxu0 %v311
      %334 = vmatprep.subr.mxu0 0.0
      %335 = vmatpush1.msra.mxu0 %v312
      %336 = vmatprep.subr.mxu0 0.0
      %337 = vmatpush1.msra.mxu0 %v313
      %338 = vmatprep.subr.mxu0 0.0
      %339 = vmatpush1.msra.mxu0 %v314
      %340 = vmatprep.subr.mxu0 0.0
      %341 = vmatpush1.msra.mxu0 %v315
      %342 = vmatprep.subr.mxu0 0.0
      %343 = vmatpush1.msra.mxu0 %v316
      %344 = vmatprep.subr.mxu0 0.0
      %345 = vmatpush1.msra.mxu0 %v317
      %346 = vmatprep.subr.mxu0 0.0
      %347 = vmatpush1.msra.mxu0 %v318
      %348 = vmatprep.subr.mxu0 0.0
      %349 = vmatpush1.msra.mxu0 %v319
      %350 = vmatprep.subr.mxu0 0.0
      %351 = vmatpush1.msra.mxu0 %v320
      %352 = vmatprep.subr.mxu0 0.0
      %353 = vmatpush1.msra.mxu0 %v321
      %354 = vmatprep.subr.mxu0 0.0
      %355 = vmatpush1.msra.mxu0 0.0
      %356 = vmatprep.subr.mxu0 0.0
      %357 = vmatpush1.msra.mxu0 0.0
      %358 = vmatprep.subr.mxu0 0.0
      %359 = vmatpush1.msra.mxu0 0.0
      %360 = vmatprep.subr.mxu0 0.0
      %361 = vmatpush1.msra.mxu0 0.0
      %362 = vmatprep.subr.mxu0 0.0
      %363 = vmatpush1.msra.mxu0 0.0
      %364 = vmatprep.subr.mxu0 0.0
      %365 = vmatpush1.msra.mxu0 0.0
      %366 = vmatprep.subr.mxu0 0.0
      %367 = vmatpush1.msra.mxu0 0.0
      %368 = vmatprep.subr.mxu0 0.0
      %369 = vmatpush1.msra.mxu0 0.0
      %370 = vmatprep.subr.mxu0 0.0
      %371 = vmatpush1.msra.mxu0 0.0
      %372 = vmatprep.subr.mxu0 0.0
      %373 = vmatpush1.msra.mxu0 0.0
      %374 = vmatprep.subr.mxu0 0.0
      %375 = vmatpush1.msra.mxu0 0.0
      %376 = vmatprep.subr.mxu0 0.0
      %377 = vmatpush1.msra.mxu0 0.0
      %378 = vmatprep.subr.mxu0 0.0
      %379 = vmatpush1.msra.mxu0 0.0
      %380 = vmatprep.subr.mxu0 0.0
      %381 = vmatpush1.msra.mxu0 0.0
      %382 = vmatprep.subr.mxu0 0.0
      %383 = vmatpush1.msra.mxu0 0.0
      %384 = vmatprep.subr.mxu0 0.0
      %385 = vmatpush1.msra.mxu0 0.0
      %386 = vmatprep.mubr.f32.mxu0 0.0
      %387 = vmatmul.mubr.f32.gmra.mrb[0].mxu0 %v298
      %v388 = vpop.f32.mrb[0].mxu0
      %v389 = vadd.f32 0.0, %v388
      %v390 = vpop.f32.mrb[0].mxu0
      %391 = vmatprep.mubr.f32.mxu0 0.0
      %392 = vmatmul.mubr.f32.gmra.mrb[0].mxu0 %v299
      %v393 = vpop.f32.mrb[0].mxu0
      %v394 = vadd.f32 0.0, %v393
      %v395 = vpop.f32.mrb[0].mxu0
      %396 = vmatprep.mubr.f32.mxu0 0.0
      %397 = vmatmul.mubr.f32.gmra.mrb[0].mxu0 %v300
      %v398 = vpop.f32.mrb[0].mxu0
      %v399 = vadd.f32 0.0, %v398
      %v400 = vpop.f32.mrb[0].mxu0
      %401 = vmatprep.mubr.f32.mxu0 0.0
      %402 = vmatmul.mubr.f32.gmra.mrb[0].mxu0 %v301
      %v403 = vpop.f32.mrb[0].mxu0
      %v404 = vadd.f32 0.0, %v403
      %v405 = vpop.f32.mrb[0].mxu0
      %406 = vmatprep.mubr.f32.mxu0 0.0
      %407 = vmatmul.mubr.f32.gmra.mrb[0].mxu0 %v302
      %v408 = vpop.f32.mrb[0].mxu0
      %v409 = vadd.f32 0.0, %v408
      %v410 = vpop.f32.mrb[0].mxu0
      %411 = vmatprep.mubr.f32.mxu0 0.0
      %412 = vmatmul.mubr.f32.gmra.mrb[0].mxu0 %v303
      %v413 = vpop.f32.mrb[0].mxu0
      %v414 = vadd.f32 0.0, %v413
      %v415 = vpop.f32.mrb[0].mxu0
      %416 = vmatprep.mubr.f32.mxu0 0.0
      %417 = vmatmul.mubr.f32.gmra.mrb[0].mxu0 %v304
      %v418 = vpop.f32.mrb[0].mxu0
      %v419 = vadd.f32 0.0, %v418
      %v420 = vpop.f32.mrb[0].mxu0
      %421 = vmatprep.mubr.f32.mxu0 0.0
      %422 = vmatmul.mubr.f32.gmra.mrb[0].mxu0 %v305
      %v423 = vpop.f32.mrb[0].mxu0
      %v424 = vadd.f32 0.0, %v423
      %v425 = vpop.f32.mrb[0].mxu0
      %426 = vdwg.mxu0
      %v427 = vadd.f32 %v290, %v389
      %v428 = vadd.f32 %v291, %v394
      %v429 = vadd.f32 %v292, %v399
      %v430 = vadd.f32 %v293, %v404
      %v431 = vadd.f32 %v294, %v409
      %v432 = vadd.f32 %v295, %v414
      %v433 = vadd.f32 %v296, %v419
      %v434 = vadd.f32 %v297, %v424
      %435 = vst [vmem:[#allocation2] sm:$0xff] %v427
      %436 = vst [vmem:[#allocation2 + $0x8] sm:$0xff] %v428
      %437 = vst [vmem:[#allocation2 + $0x10] sm:$0xff] %v429
      %438 = vst [vmem:[#allocation2 + $0x18] sm:$0xff] %v430
      %439 = vst [vmem:[#allocation2 + $0x20] sm:$0xff] %v431
      %440 = vst [vmem:[#allocation2 + $0x28] sm:$0xff] %v432
      %441 = vst [vmem:[#allocation2 + $0x30] sm:$0xff] %v433
      %442 = vst [vmem:[#allocation2 + $0x38] sm:$0xff] %v434
      // Predicated region
      $region37: #{_lambda_.7} parent=31 // pred_check
        %p443 = pneg %p278
      $region38: #{_lambda_.7} parent=31 // pred_check_branch
        %445 = sbr.rel (%p443) target = $region40
      $region39: #{_lambda_.7} parent=31 // pred_region
        %v446 = vld [vmem:[#allocation2] sm:$0xff]
        %v447 = vld [vmem:[#allocation2 + $0x8] sm:$0xff]
        %v448 = vld [vmem:[#allocation2 + $0x10] sm:$0xff]
        %v449 = vld [vmem:[#allocation2 + $0x18] sm:$0xff]
        %v450 = vld [vmem:[#allocation2 + $0x20] sm:$0xff]
        %v451 = vld [vmem:[#allocation2 + $0x28] sm:$0xff]
        %v452 = vld [vmem:[#allocation2 + $0x30] sm:$0xff]
        %v453 = vld [vmem:[#allocation2 + $0x38] sm:$0xff]
        %v454 = vld [vmem:[%s267] sm:$0xff]
        %v455 = vld [vmem:[%s267 + $0x8] sm:$0xff]
        %v456 = vld [vmem:[%s267 + $0x10] sm:$0xff]
        %v457 = vld [vmem:[%s267 + $0x18] sm:$0xff]
        %v458 = vld [vmem:[%s267 + $0x20] sm:$0xff]
        %v459 = vld [vmem:[%s267 + $0x28] sm:$0xff]
        %v460 = vld [vmem:[%s267 + $0x30] sm:$0xff]
        %v461 = vld [vmem:[%s267 + $0x38] sm:$0xff]
        %v462 = vadd.f32 %v446, %v454
        %v463 = vadd.f32 %v447, %v455
        %v464 = vadd.f32 %v448, %v456
        %v465 = vadd.f32 %v449, %v457
        %v466 = vadd.f32 %v450, %v458
        %v467 = vadd.f32 %v451, %v459
        %v468 = vadd.f32 %v452, %v460
        %v469 = vadd.f32 %v453, %v461
        %470 = vst [vmem:[%s276] sm:$0xff] %v462
        %471 = vst [vmem:[%s276 + $0x8] sm:$0xff] %v463
        %472 = vst [vmem:[%s276 + $0x10] sm:$0xff] %v464
        %473 = vst [vmem:[%s276 + $0x18] sm:$0xff] %v465
        %474 = vst [vmem:[%s276 + $0x20] sm:$0xff] %v466
        %475 = vst [vmem:[%s276 + $0x28] sm:$0xff] %v467
        %476 = vst [vmem:[%s276 + $0x30] sm:$0xff] %v468
        %477 = vst [vmem:[%s276 + $0x38] sm:$0xff] %v469
      $region40: #{_lambda_.7} parent=31 // pred_fallthru
        _
      %s478 = smul.u32 8, %s19
      %p479 = scmp.lt.s32.totalorder %s478, 15
      %s480 = scalar_select %p479, %s478, 15
      %p481 = scmp.lt.s32.totalorder %s20, 0
      %s482 = scalar_select %p481, %s20, 0
      %s483 = sadd.s32 %s482, %s480
      %s484 = smul.addr %s483, 8
      %s485 = scalar_lea.vmem %s3, %s484
      // Predicated region
      $region41: #{_lambda_.7} parent=31 // pred_check
        %p486 = pneg %p137
      $region42: #{_lambda_.7} parent=31 // pred_check_branch
        %488 = sbr.rel (%p486) target = $region44
      $region43: #{_lambda_.7} parent=31 // pred_region
        %s489 = smul.u32 8, %s19
      $region44: #{_lambda_.7} parent=31 // pred_fallthru
        _
    $region32: #{_lambda_.7} parent=5 // pred_fallthru
      _
    %p490 = scmp.le.s32.totalorder 2, %s9
    // Predicated region
    $region45: #{_lambda_.7} parent=5 // pred_check
      %p491 = pneg %p490
    $region46: #{_lambda_.7} parent=5 // pred_check_branch
      %493 = sbr.rel (%p491) target = $region48
    $region47: #{_lambda_.7} parent=5 // pred_region
      %s494 = ssub.s32 %s9, 2
      // Predicated region
      $region49: #{_lambda_.7} parent=47 // pred_check
        %p495 = pneg %p143
      $region50: #{_lambda_.7} parent=47 // pred_check_branch
        %497 = sbr.rel (%p495) target = $region52
      $region51: #{_lambda_.7} parent=47 // pred_region
        %s498 = smul.u32 8, %s22
        %p499 = scmp.lt.s32.totalorder %s498, 15
        %s500 = scalar_select %p499, %s498, 15
        %p501 = scmp.lt.s32.totalorder %s23, 0
        %s502 = scalar_select %p501, %s23, 0
        %s503 = sadd.s32 %s502, %s500
        %s504 = smul.addr %s503, 8
        %s505 = scalar_lea.vmem %s3, %s504
      $region52: #{_lambda_.7} parent=47 // pred_fallthru
        _
    $region48: #{_lambda_.7} parent=5 // pred_fallthru
      _
  $region6: #{_lambda_.7} parent=0 // loop_footer
    %s13 = sadd.s32 1, %s9
  $region7: #{_lambda_.7} parent=0 // loop_footer_branch
    %8 = sbr.rel target = $region3
  $region8: #{_lambda_.7} parent=0 // loop_exit
    _

</llo_original>
